<compile_context>
chip_gen: v7x
topology: tpu7x:2x2x1
jax: 0.10.0
libtpu: 0.0.40
codegen_flags: <defaults>
</compile_context>

<pallas_src>
import functools

import jax
import jax.numpy as jnp
from jax import lax
from jax.experimental import pallas as pl
from jax.experimental.pallas import tpu as pltpu


def _mbd_kernel(xq_ref, xk_ref, t_ref, sel_ref, out_ref, feats_ref, *, din):
    """One (query-tile, key-tile) grid point; feats accumulated over key tiles."""
    j = pl.program_id(1)

    @pl.when(j == 0)
    def _():
        feats_ref[...] = jnp.zeros_like(feats_ref)

    xq = xq_ref[...]          # (Tb, Din) query rows
    xk = xk_ref[...]          # (Tj, Din) key rows
    t = t_ref[...]            # (Din, K*D)

    # Activations on the MXU (f32 accumulation, full precision).
    act_q = jnp.dot(xq, t, preferred_element_type=jnp.float32,
                    precision=lax.Precision.HIGHEST)                 # (Tb, K*D)
    act_k = jnp.dot(xk, t, preferred_element_type=jnp.float32,
                    precision=lax.Precision.HIGHEST)                 # (Tj, K*D)

    # Pairwise |a_i - a_j| over the lane-dense K*D axis (VPU elementwise).
    ad = jnp.abs(act_q[:, None, :] - act_k[None, :, :])              # (Tb, Tj, K*D)
    tb, tj, kd = ad.shape

    # Per-kernel L1 distance via a block-diagonal 0/1 selector matmul:
    #   l1[(i, j), k] = sum_d |a[i, k, d] - a[j, k, d]|
    l1 = jnp.dot(ad.reshape(tb * tj, kd), sel_ref[...],
                 preferred_element_type=jnp.float32,
                 precision=lax.Precision.HIGHEST)                    # (Tb*Tj, K)
    k = l1.shape[-1]

    # Similarity, summed over this key tile (includes the self term exp(0)=1,
    # exactly like the PyTorch module).
    feats_ref[...] += jnp.sum(jnp.exp(-l1).reshape(tb, tj, k), axis=1)

    @pl.when(j == pl.num_programs(1) - 1)
    def _():
        out_ref[:, :din] = xq.astype(out_ref.dtype)
        out_ref[:, din:] = feats_ref[...].astype(out_ref.dtype)


def minibatch_discrimination(x, T, *, num_kernels, kernel_dim,
                             tile_b=None, tile_j=None):
    """x: (B, input_dim) f32; T: (input_dim, num_kernels*kernel_dim) f32."""
    B, din = x.shape
    kd = num_kernels * kernel_dim
    assert T.shape == (din, kd), "T must be (input_dim, num_kernels*kernel_dim)"

    if tile_b is None:
        tile_b = B if B <= 128 else 128
    if tile_j is None:
        tile_j = B if B <= 128 else 128
    assert B % tile_b == 0 and B % tile_j == 0, "batch must divide tile sizes"
    assert (tile_b % 8 == 0 or tile_b == B) and (tile_j % 8 == 0 or tile_j == B), \
        "keep batch tiles sublane-aligned"

    # Block-diagonal selector: sel[r, c] = 1 iff activation column r belongs to
    # kernel c (r // kernel_dim == c).
    sel = jnp.repeat(jnp.eye(num_kernels, dtype=jnp.float32), kernel_dim, axis=0)

    grid = (B // tile_b, B // tile_j)   # reduction (key) axis last
    kernel = functools.partial(_mbd_kernel, din=din)

    flops = (2 * B * din * kd * (grid[0] + grid[1])   # (re)computed activations
             + 2 * B * B * kd                         # pairwise diff + abs
             + 2 * B * B * kd * num_kernels)          # selector matmul
    bytes_accessed = 4 * (2 * B * din + din * kd + kd * num_kernels
                          + B * (din + num_kernels))

    return pl.pallas_call(
        kernel,
        out_shape=jax.ShapeDtypeStruct((B, din + num_kernels), x.dtype),
        grid=grid,
        in_specs=[
            pl.BlockSpec((tile_b, din), lambda i, j: (i, 0)),          # query rows
            pl.BlockSpec((tile_j, din), lambda i, j: (j, 0)),          # key rows
            pl.BlockSpec((din, kd), lambda i, j: (0, 0)),              # T
            pl.BlockSpec((kd, num_kernels), lambda i, j: (0, 0)),      # selector
        ],
        out_specs=pl.BlockSpec((tile_b, din + num_kernels), lambda i, j: (i, 0)),
        scratch_shapes=[pltpu.VMEM((tile_b, num_kernels), jnp.float32)],
        compiler_params=pltpu.CompilerParams(
            dimension_semantics=("parallel", "arbitrary")),
        cost_estimate=pl.CostEstimate(flops=flops,
                                      transcendentals=B * B * num_kernels,
                                      bytes_accessed=bytes_accessed),
    )(x, x, T, sel)


def _reference_forward(x, T, num_kernels, kernel_dim):
    """Direct JAX transcription of the PyTorch forward."""
    B = x.shape[0]
    act = jnp.dot(x, T, precision=lax.Precision.HIGHEST).reshape(
        B, num_kernels, kernel_dim)                                   # (B, K, D)
    diffs = act[:, :, :, None] - jnp.transpose(act, (1, 2, 0))[None]  # (B, K, D, B)
    abs_diffs = jnp.sum(jnp.abs(diffs), axis=2)                       # (B, K, B)
    feats = jnp.sum(jnp.exp(-abs_diffs), axis=2)                      # (B, K)
    return jnp.concatenate([x, feats], axis=1)


if __name__ == "__main__":
    key = jax.random.PRNGKey(0)
    k_x, k_t = jax.random.split(key)

    # Small shapes consistent with the module; K*D = 128 keeps lanes dense.
    batch, input_dim, num_kernels, kernel_dim = 16, 4, 8, 16

    x = jax.random.normal(k_x, (batch, input_dim), dtype=jnp.float32)
    # Matches nn.init.normal_(T, mean=0, std=0.02)
    T = 0.02 * jax.random.normal(
        k_t, (input_dim, num_kernels * kernel_dim), dtype=jnp.float32)

    # tile_b = tile_j = 8 exercises both the "parallel" query axis and the
    # accumulator (reduction) axis on a 2x2 grid.
    out = minibatch_discrimination(x, T, num_kernels=num_kernels,
                                   kernel_dim=kernel_dim, tile_b=8, tile_j=8)
    out = jax.block_until_ready(out)

    ref = _reference_forward(x, T, num_kernels, kernel_dim)
    assert out.shape == (batch, input_dim + num_kernels)
    assert jnp.allclose(out, ref, atol=1e-4, rtol=1e-4), "mismatch vs. reference"

    print("KERNEL_OK")
</pallas_src>

<mosaic_0001>
module attributes {stable_mosaic.version = 11 : i64} {
  func.func @_mbd_kernel(%arg0: i32, %arg1: i32, %arg2: memref<8x4xf32, #tpu.memory_space<vmem>>, %arg3: memref<8x4xf32, #tpu.memory_space<vmem>>, %arg4: memref<4x128xf32, #tpu.memory_space<vmem>>, %arg5: memref<128x8xf32, #tpu.memory_space<vmem>>, %arg6: memref<8x12xf32, #tpu.memory_space<vmem>>, %arg7: memref<8x8xf32, #tpu.memory_space<vmem>>) attributes {dimension_semantics = [#tpu.dimension_semantics<parallel>, #tpu.dimension_semantics<arbitrary>], iteration_bounds = array<i64: 2, 2>, scalar_prefetch = 0 : i64, scratch_operands = 1 : i64, tpu.core_type = #tpu.core_type<tc>, window_params = [{transform_indices = @transform_0, window_bounds = array<i64: 8, 4>}, {transform_indices = @transform_1, window_bounds = array<i64: 8, 4>}, {pipeline_mode = #tpu.pipeline_mode<synchronous>, transform_indices = @transform_2, window_bounds = array<i64: 4, 128>}, {pipeline_mode = #tpu.pipeline_mode<synchronous>, transform_indices = @transform_3, window_bounds = array<i64: 128, 8>}, {transform_indices = @transform_4, window_bounds = array<i64: 8, 12>}]} {
    %c0_i32 = arith.constant 0 : i32
    %0 = arith.cmpi eq, %arg1, %c0_i32 : i32
    %1 = arith.extui %0 : i1 to i32
    %c0_i32_0 = arith.constant 0 : i32
    %2 = arith.cmpi ne, %1, %c0_i32_0 : i32
    scf.if %2 {
      %cst_17 = arith.constant 0.000000e+00 : f32
      %28 = vector.broadcast %cst_17 : f32 to vector<8x8xf32>
      %c0_18 = arith.constant 0 : index
      %c0_19 = arith.constant 0 : index
      %29 = vector.load %arg7[%c0_18, %c0_19] : memref<8x8xf32, #tpu.memory_space<vmem>>, vector<8x8xf32>
      tpu.vector_store %arg7[%c0_18, %c0_19], %28 {strides = array<i32>} : memref<8x8xf32, #tpu.memory_space<vmem>>, vector<8x8xf32>,
    } else {
    }
    %c0 = arith.constant 0 : index
    %c0_1 = arith.constant 0 : index
    %3 = vector.load %arg2[%c0, %c0_1] : memref<8x4xf32, #tpu.memory_space<vmem>>, vector<8x4xf32>
    %c0_2 = arith.constant 0 : index
    %c0_3 = arith.constant 0 : index
    %4 = vector.load %arg3[%c0_2, %c0_3] : memref<8x4xf32, #tpu.memory_space<vmem>>, vector<8x4xf32>
    %c0_4 = arith.constant 0 : index
    %c0_5 = arith.constant 0 : index
    %5 = vector.load %arg4[%c0_4, %c0_5] : memref<4x128xf32, #tpu.memory_space<vmem>>, vector<4x128xf32>
    %cst = arith.constant dense<0.000000e+00> : vector<8x128xf32>
    %6 = tpu.matmul %3, %5, %cst {dimension_numbers = #tpu.dot_dimension_numbers<[1], [0], [0], [1], [0, 0, 1, 1], [], []>, precision = #tpu.contract_precision<fp32>} : vector<8x4xf32>, vector<4x128xf32>, vector<8x128xf32> -> vector<8x128xf32>
    %cst_6 = arith.constant dense<0.000000e+00> : vector<8x128xf32>
    %7 = tpu.matmul %4, %5, %cst_6 {dimension_numbers = #tpu.dot_dimension_numbers<[1], [0], [0], [1], [0, 0, 1, 1], [], []>, precision = #tpu.contract_precision<fp32>} : vector<8x4xf32>, vector<4x128xf32>, vector<8x128xf32> -> vector<8x128xf32>
    %8 = vector.shape_cast %6 : vector<8x128xf32> to vector<8x1x128xf32>
    %9 = vector.shape_cast %7 : vector<8x128xf32> to vector<1x8x128xf32>
    %10 = vector.broadcast %8 : vector<8x1x128xf32> to vector<8x8x128xf32>
    %11 = vector.broadcast %9 : vector<1x8x128xf32> to vector<8x8x128xf32>
    %12 = arith.subf %10, %11 : vector<8x8x128xf32>
    %13 = math.absf %12 : vector<8x8x128xf32>
    %14 = vector.shape_cast %13 : vector<8x8x128xf32> to vector<64x128xf32>
    %c0_7 = arith.constant 0 : index
    %c0_8 = arith.constant 0 : index
    %15 = vector.load %arg5[%c0_7, %c0_8] : memref<128x8xf32, #tpu.memory_space<vmem>>, vector<128x8xf32>
    %cst_9 = arith.constant dense<0.000000e+00> : vector<64x8xf32>
    %16 = tpu.matmul %14, %15, %cst_9 {dimension_numbers = #tpu.dot_dimension_numbers<[1], [0], [0], [1], [0, 0, 1, 1], [], []>, precision = #tpu.contract_precision<fp32>} : vector<64x128xf32>, vector<128x8xf32>, vector<64x8xf32> -> vector<64x8xf32>
    %c0_10 = arith.constant 0 : index
    %c0_11 = arith.constant 0 : index
    %17 = vector.load %arg7[%c0_10, %c0_11] : memref<8x8xf32, #tpu.memory_space<vmem>>, vector<8x8xf32>
    %cst_12 = arith.constant 0.000000e+00 : f32
    %18 = vector.broadcast %cst_12 : f32 to vector<64x8xf32>
    %19 = arith.subf %18, %16 : vector<64x8xf32>
    %20 = math.exp %19 : vector<64x8xf32>
    %21 = vector.shape_cast %20 : vector<64x8xf32> to vector<8x8x8xf32>
    %cst_13 = arith.constant dense<0.000000e+00> : vector<8x8xf32>
    %22 = vector.multi_reduction <add>, %21, %cst_13 [1] : vector<8x8x8xf32> to vector<8x8xf32>
    %23 = arith.addf %17, %22 : vector<8x8xf32>
    %c0_14 = arith.constant 0 : index
    %c0_15 = arith.constant 0 : index
    %24 = vector.load %arg7[%c0_14, %c0_15] : memref<8x8xf32, #tpu.memory_space<vmem>>, vector<8x8xf32>
    tpu.vector_store %arg7[%c0_14, %c0_15], %23 {strides = array<i32>} : memref<8x8xf32, #tpu.memory_space<vmem>>, vector<8x8xf32>,
    %c1_i32 = arith.constant 1 : i32
    %25 = arith.cmpi eq, %arg1, %c1_i32 : i32
    %26 = arith.extui %25 : i1 to i32
    %c0_i32_16 = arith.constant 0 : i32
    %27 = arith.cmpi ne, %26, %c0_i32_16 : i32
    scf.if %27 {
      %c0_17 = arith.constant 0 : index
      %c0_18 = arith.constant 0 : index
      %28 = vector.load %arg6[%c0_17, %c0_18] : memref<8x12xf32, #tpu.memory_space<vmem>>, vector<8x4xf32>
      tpu.vector_store %arg6[%c0_17, %c0_18], %3 {strides = array<i32>} : memref<8x12xf32, #tpu.memory_space<vmem>>, vector<8x4xf32>,
      %c0_19 = arith.constant 0 : index
      %c0_20 = arith.constant 0 : index
      %29 = vector.load %arg7[%c0_19, %c0_20] : memref<8x8xf32, #tpu.memory_space<vmem>>, vector<8x8xf32>
      %c0_21 = arith.constant 0 : index
      %c4 = arith.constant 4 : index
      %30 = vector.load %arg6[%c0_21, %c4] : memref<8x12xf32, #tpu.memory_space<vmem>>, vector<8x8xf32>
      tpu.vector_store %arg6[%c0_21, %c4], %29 {strides = array<i32>} : memref<8x12xf32, #tpu.memory_space<vmem>>, vector<8x8xf32>,
    } else {
    }
    return
  }
  func.func @transform_0(%arg0: i32, %arg1: i32) -> (i32, i32) {
    %c0_i32 = arith.constant 0 : i32
    %c0_i32_0 = arith.constant 0 : i32
    return %arg0, %c0_i32 : i32, i32
  }
  func.func @transform_1(%arg0: i32, %arg1: i32) -> (i32, i32) {
    %c0_i32 = arith.constant 0 : i32
    %c0_i32_0 = arith.constant 0 : i32
    return %arg1, %c0_i32 : i32, i32
  }
  func.func @transform_2(%arg0: i32, %arg1: i32) -> (i32, i32) {
    %c0_i32 = arith.constant 0 : i32
    %c0_i32_0 = arith.constant 0 : i32
    %c0_i32_1 = arith.constant 0 : i32
    return %c0_i32, %c0_i32_0 : i32, i32
  }
  func.func @transform_3(%arg0: i32, %arg1: i32) -> (i32, i32) {
    %c0_i32 = arith.constant 0 : i32
    %c0_i32_0 = arith.constant 0 : i32
    %c0_i32_1 = arith.constant 0 : i32
    return %c0_i32, %c0_i32_0 : i32, i32
  }
  func.func @transform_4(%arg0: i32, %arg1: i32) -> (i32, i32) {
    %c0_i32 = arith.constant 0 : i32
    %c0_i32_0 = arith.constant 0 : i32
    return %arg0, %c0_i32 : i32, i32
  }
}

</mosaic_0001>

<llo_original>
// kernel: tpu_custom_call.1
$region0: #{tpu_custom_call.1}
  #allocation0 [shape = 'u32[]', space=smem, size = 0x4, offset = 0x4, fixed_abs, tag = 'smem constant byte address 0x4 - core index']
  #allocation1 [shape = 'u32[144,128]{1,0:T(1,128)}', space=vmem, size = 0x12000, scoped, tag = 'internal scratch']
  #allocation2 [shape = 'f32[8,8]{1,0:T(8,128)}', space=vmem, size = 0x1000, scoped, tag = 'scratch operand']
  %s0 = inlined_call_operand.vmem [shape: f32[16,4], index: 0, kind: input, shape index: {}]
  %s1 = inlined_call_operand.vmem [shape: f32[16,4], index: 1, kind: input, shape index: {}]
  %s2 = inlined_call_operand.vmem [shape: f32[4,128], index: 2, kind: input, shape index: {}]
  %s3 = inlined_call_operand.vmem [shape: f32[128,8], index: 3, kind: input, shape index: {}]
  %s4 = inlined_call_operand.hbm [shape: f32[16,12], index: 4, kind: output, shape index: {}]
  %s5 = sld [smem:[#allocation0]]
  $region57: #{tpu_custom_call.1} parent=0
    _
  %s7 = ssub.s32 1, %s5
  %s8 = scalar_select 0, %s7, %s5
  $region1: #{tpu_custom_call.1} parent=0
    #allocation3 [shape = 'u8[8192]{0}', space=vmem, size = 0x2000, scoped, tag = 'output window, operand 0']
    #allocation4 [shape = 's32[2]{0}', space=sflag, size = 0x8, scoped, tag = 'scoped memory for tpu_custom_call.1']
    %9 = vsyncpa [#allocation4], 0
    %s10 = scalar_lea.sflag [#allocation4], 1
    %11 = vsyncpa %s10, 0
    loop: start=0, step=1, limit=6
    $region2: #{tpu_custom_call.1} parent=1 // loop_pre_header
      _
    $region3: #{tpu_custom_call.1} parent=1 // loop_header
      %s13 = sphi 0, %s17
      %p14 = scmp.ge.s32.totalorder %s13, 6
      %s20 = sphi 0, %s32
      %s21 = sphi 0, %s28
      %s22 = sphi 0, %s20
      %s23 = sphi 0, %s21
      %s24 = sphi 0, %s22
      %s25 = sphi 0, %s23
      %s35 = sphi 0, %s37
      %s38 = sphi 0, %s35
      %s39 = sphi 0, %s38
      %s55 = sphi 0, %s39
      %s61 = sphi 0, %s63
      %s64 = sphi 0, %s61
      %s65 = sphi 0, %s64
      %s81 = sphi 0, %s65
      %s85 = sphi 0, %s85
      %s87 = sphi 0, %s85
      %s88 = sphi 0, %s87
      %s102 = sphi 0, %s88
      %s106 = sphi 0, %s106
      %s108 = sphi 0, %s106
      %s109 = sphi 0, %s108
      %s123 = sphi 0, %s109
      %s129 = sphi 0, %s131
      %s132 = sphi 0, %s129
      %s133 = sphi 0, %s132
      %s149 = sphi 0, %s133
    $region4: #{tpu_custom_call.1} parent=1 // loop_header_branch
      %16 = sbr.rel (%p14) target = $region8
    $region5: #{tpu_custom_call.1} parent=1 // loop_body
      %s18 = ssub.s32 %s13, 1
      %s19 = ssub.s32 %s13, 2
      %s26 = sadd.s32 1, %s21
      %p27 = scmp.ge.s32.totalorder %s26, 2
      %s28 = scalar_select %p27, 0, %s26
      %s29 = sadd.s32 1, %s20
      %s30 = scalar_select %p27, %s29, %s20
      %p31 = scmp.ge.s32.totalorder %s30, 2
      %s32 = scalar_select %p31, 0, %s30
      %s33 = ssub.s32 %s20, %s32
      %p34 = scmp.eq.s32.totalorder %s33, 0
      %s36 = sadd.s32 %s35, 1
      %s37 = scalar_select %p34, %s35, %s36
      %p40 = pneg %p34
      %p41 = scmp.eq.s32.totalorder %s13, 3
      %p42 = por %p40, %p41
      %p43 = scmp.ne.s32.totalorder %s35, %s38
      %p44 = scmp.eq.s32.totalorder %s13, 0
      %p45 = por %p43, %p44
      %p46 = scmp.ne.s32.totalorder %s35, %s38
      %p47 = scmp.eq.s32.totalorder %s18, 3
      %p48 = por %p46, %p47
      %p49 = scmp.ne.s32.totalorder %s38, %s39
      %p50 = scmp.eq.s32.totalorder %s18, 0
      %p51 = por %p49, %p50
      %p52 = scmp.ne.s32.totalorder %s38, %s39
      %p53 = scmp.eq.s32.totalorder %s19, 3
      %p54 = por %p52, %p53
      %p56 = scmp.ne.s32.totalorder %s39, %s55
      %p57 = scmp.eq.s32.totalorder %s19, 0
      %p58 = por %p56, %p57
      %s59 = ssub.s32 %s21, %s28
      %p60 = scmp.eq.s32.totalorder %s59, 0
      %s62 = sadd.s32 %s61, 1
      %s63 = scalar_select %p60, %s61, %s62
      %p66 = pneg %p60
      %p67 = scmp.eq.s32.totalorder %s13, 3
      %p68 = por %p66, %p67
      %p69 = scmp.ne.s32.totalorder %s61, %s64
      %p70 = scmp.eq.s32.totalorder %s13, 0
      %p71 = por %p69, %p70
      %p72 = scmp.ne.s32.totalorder %s61, %s64
      %p73 = scmp.eq.s32.totalorder %s18, 3
      %p74 = por %p72, %p73
      %p75 = scmp.ne.s32.totalorder %s64, %s65
      %p76 = scmp.eq.s32.totalorder %s18, 0
      %p77 = por %p75, %p76
      %p78 = scmp.ne.s32.totalorder %s64, %s65
      %p79 = scmp.eq.s32.totalorder %s19, 3
      %p80 = por %p78, %p79
      %p82 = scmp.ne.s32.totalorder %s65, %s81
      %p83 = scmp.eq.s32.totalorder %s19, 0
      %p84 = por %p82, %p83
      %s86 = sadd.s32 %s85, 1
      %p89 = scmp.eq.s32.totalorder %s13, 3
      %p90 = scmp.ne.s32.totalorder %s85, %s87
      %p91 = scmp.eq.s32.totalorder %s13, 0
      %p92 = por %p90, %p91
      %p93 = scmp.ne.s32.totalorder %s85, %s87
      %p94 = scmp.eq.s32.totalorder %s18, 3
      %p95 = por %p93, %p94
      %p96 = scmp.ne.s32.totalorder %s87, %s88
      %p97 = scmp.eq.s32.totalorder %s18, 0
      %p98 = por %p96, %p97
      %p99 = scmp.ne.s32.totalorder %s87, %s88
      %p100 = scmp.eq.s32.totalorder %s19, 3
      %p101 = por %p99, %p100
      %p103 = scmp.ne.s32.totalorder %s88, %s102
      %p104 = scmp.eq.s32.totalorder %s19, 0
      %p105 = por %p103, %p104
      %s107 = sadd.s32 %s106, 1
      %p110 = scmp.eq.s32.totalorder %s13, 3
      %p111 = scmp.ne.s32.totalorder %s106, %s108
      %p112 = scmp.eq.s32.totalorder %s13, 0
      %p113 = por %p111, %p112
      %p114 = scmp.ne.s32.totalorder %s106, %s108
      %p115 = scmp.eq.s32.totalorder %s18, 3
      %p116 = por %p114, %p115
      %p117 = scmp.ne.s32.totalorder %s108, %s109
      %p118 = scmp.eq.s32.totalorder %s18, 0
      %p119 = por %p117, %p118
      %p120 = scmp.ne.s32.totalorder %s108, %s109
      %p121 = scmp.eq.s32.totalorder %s19, 3
      %p122 = por %p120, %p121
      %p124 = scmp.ne.s32.totalorder %s109, %s123
      %p125 = scmp.eq.s32.totalorder %s19, 0
      %p126 = por %p124, %p125
      %s127 = ssub.s32 %s20, %s32
      %p128 = scmp.eq.s32.totalorder %s127, 0
      %s130 = sadd.s32 %s129, 1
      %s131 = scalar_select %p128, %s129, %s130
      %p134 = pneg %p128
      %p135 = scmp.eq.s32.totalorder %s13, 3
      %p136 = por %p134, %p135
      %p137 = scmp.ne.s32.totalorder %s129, %s132
      %p138 = scmp.eq.s32.totalorder %s13, 0
      %p139 = por %p137, %p138
      %p140 = scmp.ne.s32.totalorder %s129, %s132
      %p141 = scmp.eq.s32.totalorder %s18, 3
      %p142 = por %p140, %p141
      %p143 = scmp.ne.s32.totalorder %s132, %s133
      %p144 = scmp.eq.s32.totalorder %s18, 0
      %p145 = por %p143, %p144
      %p146 = scmp.ne.s32.totalorder %s132, %s133
      %p147 = scmp.eq.s32.totalorder %s19, 3
      %p148 = por %p146, %p147
      %p150 = scmp.ne.s32.totalorder %s133, %s149
      %p151 = scmp.eq.s32.totalorder %s19, 0
      %p152 = por %p150, %p151
      %p153 = scmp.le.s32.totalorder 1, %s13
      %p154 = scmp.lt.s32.totalorder %s13, 5
      %p155 = pnand %p153, %p154
      %p156 = pneg %p155
      // Predicated region
      $region9: #{tpu_custom_call.1} parent=5 // pred_check
        _
      $region10: #{tpu_custom_call.1} parent=5 // pred_check_branch
        %158 = sbr.rel (%p155) target = $region12
      $region11: #{tpu_custom_call.1} parent=5 // pred_region
        %s159 = ssub.s32 %s13, 1
        // Predicated region
        $region13: #{tpu_custom_call.1} parent=11 // pred_check
          %p160 = pneg %p98
        $region14: #{tpu_custom_call.1} parent=11 // pred_check_branch
          %162 = sbr.rel (%p160) target = $region16
        $region15: #{tpu_custom_call.1} parent=11 // pred_region
          _
        $region16: #{tpu_custom_call.1} parent=11 // pred_fallthru
          _
        // Predicated region
        $region17: #{tpu_custom_call.1} parent=11 // pred_check
          %p163 = pneg %p119
        $region18: #{tpu_custom_call.1} parent=11 // pred_check_branch
          %165 = sbr.rel (%p163) target = $region20
        $region19: #{tpu_custom_call.1} parent=11 // pred_region
          _
        $region20: #{tpu_custom_call.1} parent=11 // pred_fallthru
          _
      $region12: #{tpu_custom_call.1} parent=5 // pred_fallthru
        _
      %p166 = scmp.lt.s32.totalorder %s13, 4
      // Predicated region
      $region21: #{tpu_custom_call.1} parent=5 // pred_check
        %p167 = pneg %p166
      $region22: #{tpu_custom_call.1} parent=5 // pred_check_branch
        %169 = sbr.rel (%p167) target = $region24
      $region23: #{tpu_custom_call.1} parent=5 // pred_region
        // Predicated region
        $region25: #{tpu_custom_call.1} parent=23 // pred_check
          %p170 = pneg %p45
        $region26: #{tpu_custom_call.1} parent=23 // pred_check_branch
          %172 = sbr.rel (%p170) target = $region28
        $region27: #{tpu_custom_call.1} parent=23 // pred_region
          %p173 = scmp.lt.s32.totalorder %s20, 1
          %s174 = scalar_select %p173, %s20, 1
          %s175 = smul.addr %s174, 8
          %s176 = scalar_lea.vmem %s0, %s175
        $region28: #{tpu_custom_call.1} parent=23 // pred_fallthru
          _
        // Predicated region
        $region29: #{tpu_custom_call.1} parent=23 // pred_check
          %p177 = pneg %p71
        $region30: #{tpu_custom_call.1} parent=23 // pred_check_branch
          %179 = sbr.rel (%p177) target = $region32
        $region31: #{tpu_custom_call.1} parent=23 // pred_region
          %p180 = scmp.lt.s32.totalorder %s21, 1
          %s181 = scalar_select %p180, %s21, 1
          %s182 = smul.addr %s181, 8
          %s183 = scalar_lea.vmem %s1, %s182
        $region32: #{tpu_custom_call.1} parent=23 // pred_fallthru
          _
      $region24: #{tpu_custom_call.1} parent=5 // pred_fallthru
        _
      %p184 = scmp.le.s32.totalorder 1, %s13
      %p185 = scmp.lt.s32.totalorder %s13, 5
      %p186 = pnand %p184, %p185
      %p187 = pneg %p186
      // Predicated region
      $region33: #{tpu_custom_call.1} parent=5 // pred_check
        _
      $region34: #{tpu_custom_call.1} parent=5 // pred_check_branch
        %189 = sbr.rel (%p186) target = $region36
      $region35: #{tpu_custom_call.1} parent=5 // pred_region
        %s190 = ssub.s32 %s13, 1
        %p191 = scmp.lt.s32.totalorder %s22, 1
        %s192 = scalar_select %p191, %s22, 1
        %s193 = smul.addr %s192, 8
        %s194 = scalar_lea.vmem %s0, %s193
        %p195 = pneg %p51
        %p196 = pneg %p48
        %p197 = scmp.lt.s32.totalorder %s23, 1
        %s198 = scalar_select %p197, %s23, 1
        %s199 = smul.addr %s198, 8
        %s200 = scalar_lea.vmem %s1, %s199
        %p201 = pneg %p77
        %p202 = pneg %p74
        %p203 = pneg %p98
        %p204 = pneg %p95
        %p205 = pneg %p119
        %p206 = pneg %p116
        %p207 = pneg %p145
        %p208 = pneg %p142
        %s209 = sand.u32 %s132, 1
        %s210 = scalar_lea.sflag [#allocation4], %s209
        %s211 = sand.u32 %s132, 1
        %s212 = smul.addr %s211, 8
        %s213 = scalar_lea.vmem [#allocation3], %s212
        %p214 = scmp.lt.s32.totalorder %s22, 1
        %s215 = scalar_select %p214, %s22, 1
        %s216 = smul.addr %s215, 8
        %s217 = scalar_lea.vmem %s0, %s216
        %p218 = scmp.lt.s32.totalorder %s23, 1
        %s219 = scalar_select %p218, %s23, 1
        %s220 = smul.addr %s219, 8
        %s221 = scalar_lea.vmem %s1, %s220
        %p222 = scmp.eq.s32.totalorder %s23, 0
        // Predicated region
        $region37: #{tpu_custom_call.1} parent=35 // pred_check
          %p223 = pneg %p222
        $region38: #{tpu_custom_call.1} parent=35 // pred_check_branch
          %225 = sbr.rel (%p223) target = $region40
        $region39: #{tpu_custom_call.1} parent=35 // pred_region
          %vm226 = vcmask 64512
          %227 = vst.msk [vmem:[#allocation2] sm:$0xff] %vm226, 0.0
        $region40: #{tpu_custom_call.1} parent=35 // pred_fallthru
          _
        %v228 = vld [vmem:[%s217] sm:$0xff]
        %v229 = vld [vmem:[%s221] sm:$0xff]
        %v230 = vld [vmem:[%s2] sm:$0xf]
        %vm231 = vcmask 31744
        %v233 = vsel %vm231, %v228, 0
        %vm235 = vcmask 1043456
        %v237 = vsel %vm235, %v230, 0
        %239 = vmatprep.subr.mxu0 0.0
        %v240 = vand.u32 %v237, 4294901760
        %241 = vmatpush1.msra.mxu0 %v240
        %242 = vmatprep.subr.mxu0 0.0
        %243 = vmatpush1.msra.mxu0 0.0
        %244 = vmatprep.subr.mxu0 0.0
        %245 = vmatpush1.msra.mxu0 0.0
        %246 = vmatprep.subr.mxu0 0.0
        %247 = vmatpush1.msra.mxu0 0.0
        %248 = vmatprep.subr.mxu0 0.0
        %249 = vmatpush1.msra.mxu0 0.0
        %250 = vmatprep.subr.mxu0 0.0
        %251 = vmatpush1.msra.mxu0 0.0
        %252 = vmatprep.subr.mxu0 0.0
        %253 = vmatpush1.msra.mxu0 0.0
        %254 = vmatprep.subr.mxu0 0.0
        %255 = vmatpush1.msra.mxu0 0.0
        %256 = vmatprep.subr.mxu0 0.0
        %257 = vmatpush1.msra.mxu0 0.0
        %258 = vmatprep.subr.mxu0 0.0
        %259 = vmatpush1.msra.mxu0 0.0
        %260 = vmatprep.subr.mxu0 0.0
        %261 = vmatpush1.msra.mxu0 0.0
        %262 = vmatprep.subr.mxu0 0.0
        %263 = vmatpush1.msra.mxu0 0.0
        %264 = vmatprep.subr.mxu0 0.0
        %265 = vmatpush1.msra.mxu0 0.0
        %266 = vmatprep.subr.mxu0 0.0
        %267 = vmatpush1.msra.mxu0 0.0
        %268 = vmatprep.subr.mxu0 0.0
        %269 = vmatpush1.msra.mxu0 0.0
        %270 = vmatprep.subr.mxu0 0.0
        %271 = vmatpush1.msra.mxu0 0.0
        %272 = vmatprep.subr.mxu0 0.0
        %273 = vmatpush1.msra.mxu0 0.0
        %274 = vmatprep.subr.mxu0 0.0
        %275 = vmatpush1.msra.mxu0 0.0
        %276 = vmatprep.subr.mxu0 0.0
        %277 = vmatpush1.msra.mxu0 0.0
        %278 = vmatprep.subr.mxu0 0.0
        %279 = vmatpush1.msra.mxu0 0.0
        %280 = vmatprep.subr.mxu0 0.0
        %281 = vmatpush1.msra.mxu0 0.0
        %282 = vmatprep.subr.mxu0 0.0
        %283 = vmatpush1.msra.mxu0 0.0
        %284 = vmatprep.subr.mxu0 0.0
        %285 = vmatpush1.msra.mxu0 0.0
        %286 = vmatprep.subr.mxu0 0.0
        %287 = vmatpush1.msra.mxu0 0.0
        %288 = vmatprep.subr.mxu0 0.0
        %289 = vmatpush1.msra.mxu0 0.0
        %290 = vmatprep.subr.mxu0 0.0
        %291 = vmatpush1.msra.mxu0 0.0
        %292 = vmatprep.subr.mxu0 0.0
        %293 = vmatpush1.msra.mxu0 0.0
        %294 = vmatprep.subr.mxu0 0.0
        %295 = vmatpush1.msra.mxu0 0.0
        %296 = vmatprep.subr.mxu0 0.0
        %297 = vmatpush1.msra.mxu0 0.0
        %298 = vmatprep.subr.mxu0 0.0
        %299 = vmatpush1.msra.mxu0 0.0
        %300 = vmatprep.subr.mxu0 0.0
        %301 = vmatpush1.msra.mxu0 0.0
        %302 = vmatprep.subr.mxu0 0.0
        %303 = vmatpush1.msra.mxu0 0.0
        %304 = vmatprep.mubr.f32.mxu0 0.0
        %v305 = vand.u32 %v233, 4294901760
        %v306 = vsub.f32 %v233, %v305
        %v307 = vand.u32 %v306, 4294901760
        %v308 = vsub.f32 %v306, %v307
        %v309 = vand.u32 %v308, 4294901760
        %310 = vmatmul.mubr.f32.gmra.mrb[0].mxu0 %v309
        %v311 = vpop.f32.mrb[0].mxu0
        %v312 = vadd.f32 0.0, %v311
        %v313 = vpop.f32.mrb[0].mxu0
        %314 = vdwg.mxu0
        %315 = vmatprep.subr.mxu0 0.0
        %v316 = vand.u32 %v237, 4294901760
        %v317 = vsub.f32 %v237, %v316
        %v318 = vand.u32 %v317, 4294901760
        %v319 = vsub.f32 %v317, %v318
        %v320 = vand.u32 %v319, 4294901760
        %321 = vmatpush1.msra.mxu0 %v320
        %322 = vmatprep.subr.mxu0 0.0
        %323 = vmatpush1.msra.mxu0 0.0
        %324 = vmatprep.subr.mxu0 0.0
        %325 = vmatpush1.msra.mxu0 0.0
        %326 = vmatprep.subr.mxu0 0.0
        %327 = vmatpush1.msra.mxu0 0.0
        %328 = vmatprep.subr.mxu0 0.0
        %329 = vmatpush1.msra.mxu0 0.0
        %330 = vmatprep.subr.mxu0 0.0
        %331 = vmatpush1.msra.mxu0 0.0
        %332 = vmatprep.subr.mxu0 0.0
        %333 = vmatpush1.msra.mxu0 0.0
        %334 = vmatprep.subr.mxu0 0.0
        %335 = vmatpush1.msra.mxu0 0.0
        %336 = vmatprep.subr.mxu0 0.0
        %337 = vmatpush1.msra.mxu0 0.0
        %338 = vmatprep.subr.mxu0 0.0
        %339 = vmatpush1.msra.mxu0 0.0
        %340 = vmatprep.subr.mxu0 0.0
        %341 = vmatpush1.msra.mxu0 0.0
        %342 = vmatprep.subr.mxu0 0.0
        %343 = vmatpush1.msra.mxu0 0.0
        %344 = vmatprep.subr.mxu0 0.0
        %345 = vmatpush1.msra.mxu0 0.0
        %346 = vmatprep.subr.mxu0 0.0
        %347 = vmatpush1.msra.mxu0 0.0
        %348 = vmatprep.subr.mxu0 0.0
        %349 = vmatpush1.msra.mxu0 0.0
        %350 = vmatprep.subr.mxu0 0.0
        %351 = vmatpush1.msra.mxu0 0.0
        %352 = vmatprep.subr.mxu0 0.0
        %353 = vmatpush1.msra.mxu0 0.0
        %354 = vmatprep.subr.mxu0 0.0
        %355 = vmatpush1.msra.mxu0 0.0
        %356 = vmatprep.subr.mxu0 0.0
        %357 = vmatpush1.msra.mxu0 0.0
        %358 = vmatprep.subr.mxu0 0.0
        %359 = vmatpush1.msra.mxu0 0.0
        %360 = vmatprep.subr.mxu0 0.0
        %361 = vmatpush1.msra.mxu0 0.0
        %362 = vmatprep.subr.mxu0 0.0
        %363 = vmatpush1.msra.mxu0 0.0
        %364 = vmatprep.subr.mxu0 0.0
        %365 = vmatpush1.msra.mxu0 0.0
        %366 = vmatprep.subr.mxu0 0.0
        %367 = vmatpush1.msra.mxu0 0.0
        %368 = vmatprep.subr.mxu0 0.0
        %369 = vmatpush1.msra.mxu0 0.0
        %370 = vmatprep.subr.mxu0 0.0
        %371 = vmatpush1.msra.mxu0 0.0
        %372 = vmatprep.subr.mxu0 0.0
        %373 = vmatpush1.msra.mxu0 0.0
        %374 = vmatprep.subr.mxu0 0.0
        %375 = vmatpush1.msra.mxu0 0.0
        %376 = vmatprep.subr.mxu0 0.0
        %377 = vmatpush1.msra.mxu0 0.0
        %378 = vmatprep.subr.mxu0 0.0
        %379 = vmatpush1.msra.mxu0 0.0
        %380 = vmatprep.subr.mxu0 0.0
        %381 = vmatpush1.msra.mxu0 0.0
        %382 = vmatprep.subr.mxu0 0.0
        %383 = vmatpush1.msra.mxu0 0.0
        %384 = vmatprep.mubr.f32.mxu0 0.0
        %v385 = vand.u32 %v233, 4294901760
        %386 = vmatmul.mubr.f32.gmra.mrb[0].mxu0 %v385
        %v387 = vpop.f32.mrb[0].mxu0
        %v388 = vadd.f32 %v312, %v387
        %v389 = vpop.f32.mrb[0].mxu0
        %390 = vdwg.mxu0
        %391 = vmatprep.subr.mxu0 0.0
        %v392 = vand.u32 %v237, 4294901760
        %v393 = vsub.f32 %v237, %v392
        %394 = vmatpush1.msra.mxu0 %v393
        %395 = vmatprep.subr.mxu0 0.0
        %396 = vmatpush1.msra.mxu0 0.0
        %397 = vmatprep.subr.mxu0 0.0
        %398 = vmatpush1.msra.mxu0 0.0
        %399 = vmatprep.subr.mxu0 0.0
        %400 = vmatpush1.msra.mxu0 0.0
        %401 = vmatprep.subr.mxu0 0.0
        %402 = vmatpush1.msra.mxu0 0.0
        %403 = vmatprep.subr.mxu0 0.0
        %404 = vmatpush1.msra.mxu0 0.0
        %405 = vmatprep.subr.mxu0 0.0
        %406 = vmatpush1.msra.mxu0 0.0
        %407 = vmatprep.subr.mxu0 0.0
        %408 = vmatpush1.msra.mxu0 0.0
        %409 = vmatprep.subr.mxu0 0.0
        %410 = vmatpush1.msra.mxu0 0.0
        %411 = vmatprep.subr.mxu0 0.0
        %412 = vmatpush1.msra.mxu0 0.0
        %413 = vmatprep.subr.mxu0 0.0
        %414 = vmatpush1.msra.mxu0 0.0
        %415 = vmatprep.subr.mxu0 0.0
        %416 = vmatpush1.msra.mxu0 0.0
        %417 = vmatprep.subr.mxu0 0.0
        %418 = vmatpush1.msra.mxu0 0.0
        %419 = vmatprep.subr.mxu0 0.0
        %420 = vmatpush1.msra.mxu0 0.0
        %421 = vmatprep.subr.mxu0 0.0
        %422 = vmatpush1.msra.mxu0 0.0
        %423 = vmatprep.subr.mxu0 0.0
        %424 = vmatpush1.msra.mxu0 0.0
        %425 = vmatprep.subr.mxu0 0.0
        %426 = vmatpush1.msra.mxu0 0.0
        %427 = vmatprep.subr.mxu0 0.0
        %428 = vmatpush1.msra.mxu0 0.0
        %429 = vmatprep.subr.mxu0 0.0
        %430 = vmatpush1.msra.mxu0 0.0
        %431 = vmatprep.subr.mxu0 0.0
        %432 = vmatpush1.msra.mxu0 0.0
        %433 = vmatprep.subr.mxu0 0.0
        %434 = vmatpush1.msra.mxu0 0.0
        %435 = vmatprep.subr.mxu0 0.0
        %436 = vmatpush1.msra.mxu0 0.0
        %437 = vmatprep.subr.mxu0 0.0
        %438 = vmatpush1.msra.mxu0 0.0
        %439 = vmatprep.subr.mxu0 0.0
        %440 = vmatpush1.msra.mxu0 0.0
        %441 = vmatprep.subr.mxu0 0.0
        %442 = vmatpush1.msra.mxu0 0.0
        %443 = vmatprep.subr.mxu0 0.0
        %444 = vmatpush1.msra.mxu0 0.0
        %445 = vmatprep.subr.mxu0 0.0
        %446 = vmatpush1.msra.mxu0 0.0
        %447 = vmatprep.subr.mxu0 0.0
        %448 = vmatpush1.msra.mxu0 0.0
        %449 = vmatprep.subr.mxu0 0.0
        %450 = vmatpush1.msra.mxu0 0.0
        %451 = vmatprep.subr.mxu0 0.0
        %452 = vmatpush1.msra.mxu0 0.0
        %453 = vmatprep.subr.mxu0 0.0
        %454 = vmatpush1.msra.mxu0 0.0
        %455 = vmatprep.subr.mxu0 0.0
        %456 = vmatpush1.msra.mxu0 0.0
        %457 = vmatprep.mubr.f32.mxu0 0.0
        %v458 = vand.u32 %v233, 4294901760
        %v459 = vsub.f32 %v233, %v458
        %460 = vmatmul.mubr.f32.gmra.mrb[0].mxu0 %v459
        %v461 = vpop.f32.mrb[0].mxu0
        %v462 = vadd.f32 %v388, %v461
        %v463 = vpop.f32.mrb[0].mxu0
        %464 = vdwg.mxu0
        %465 = vmatprep.subr.mxu0 0.0
        %v466 = vand.u32 %v237, 4294901760
        %467 = vmatpush1.msra.mxu0 %v466
        %468 = vmatprep.subr.mxu0 0.0
        %469 = vmatpush1.msra.mxu0 0.0
        %470 = vmatprep.subr.mxu0 0.0
        %471 = vmatpush1.msra.mxu0 0.0
        %472 = vmatprep.subr.mxu0 0.0
        %473 = vmatpush1.msra.mxu0 0.0
        %474 = vmatprep.subr.mxu0 0.0
        %475 = vmatpush1.msra.mxu0 0.0
        %476 = vmatprep.subr.mxu0 0.0
        %477 = vmatpush1.msra.mxu0 0.0
        %478 = vmatprep.subr.mxu0 0.0
        %479 = vmatpush1.msra.mxu0 0.0
        %480 = vmatprep.subr.mxu0 0.0
        %481 = vmatpush1.msra.mxu0 0.0
        %482 = vmatprep.subr.mxu0 0.0
        %483 = vmatpush1.msra.mxu0 0.0
        %484 = vmatprep.subr.mxu0 0.0
        %485 = vmatpush1.msra.mxu0 0.0
        %486 = vmatprep.subr.mxu0 0.0
        %487 = vmatpush1.msra.mxu0 0.0
        %488 = vmatprep.subr.mxu0 0.0
        %489 = vmatpush1.msra.mxu0 0.0
        %490 = vmatprep.subr.mxu0 0.0
        %491 = vmatpush1.msra.mxu0 0.0
        %492 = vmatprep.subr.mxu0 0.0
        %493 = vmatpush1.msra.mxu0 0.0
        %494 = vmatprep.subr.mxu0 0.0
        %495 = vmatpush1.msra.mxu0 0.0
        %496 = vmatprep.subr.mxu0 0.0
        %497 = vmatpush1.msra.mxu0 0.0
        %498 = vmatprep.subr.mxu0 0.0
        %499 = vmatpush1.msra.mxu0 0.0
        %500 = vmatprep.subr.mxu0 0.0
        %501 = vmatpush1.msra.mxu0 0.0
        %502 = vmatprep.subr.mxu0 0.0
        %503 = vmatpush1.msra.mxu0 0.0
        %504 = vmatprep.subr.mxu0 0.0
        %505 = vmatpush1.msra.mxu0 0.0
        %506 = vmatprep.subr.mxu0 0.0
        %507 = vmatpush1.msra.mxu0 0.0
        %508 = vmatprep.subr.mxu0 0.0
        %509 = vmatpush1.msra.mxu0 0.0
        %510 = vmatprep.subr.mxu0 0.0
        %511 = vmatpush1.msra.mxu0 0.0
        %512 = vmatprep.subr.mxu0 0.0
        %513 = vmatpush1.msra.mxu0 0.0
        %514 = vmatprep.subr.mxu0 0.0
        %515 = vmatpush1.msra.mxu0 0.0
        %516 = vmatprep.subr.mxu0 0.0
        %517 = vmatpush1.msra.mxu0 0.0
        %518 = vmatprep.subr.mxu0 0.0
        %519 = vmatpush1.msra.mxu0 0.0
        %520 = vmatprep.subr.mxu0 0.0
        %521 = vmatpush1.msra.mxu0 0.0
        %522 = vmatprep.subr.mxu0 0.0
        %523 = vmatpush1.msra.mxu0 0.0
        %524 = vmatprep.subr.mxu0 0.0
        %525 = vmatpush1.msra.mxu0 0.0
        %526 = vmatprep.subr.mxu0 0.0
        %527 = vmatpush1.msra.mxu0 0.0
        %528 = vmatprep.subr.mxu0 0.0
        %529 = vmatpush1.msra.mxu0 0.0
        %530 = vmatprep.mubr.f32.mxu0 0.0
        %v531 = vand.u32 %v233, 4294901760
        %v532 = vsub.f32 %v233, %v531
        %v533 = vand.u32 %v532, 4294901760
        %534 = vmatmul.mubr.f32.gmra.mrb[0].mxu0 %v533
        %v535 = vpop.f32.mrb[0].mxu0
        %v536 = vadd.f32 %v462, %v535
        %v537 = vpop.f32.mrb[0].mxu0
        %538 = vdwg.mxu0
        %539 = vmatprep.subr.mxu0 0.0
        %v540 = vand.u32 %v237, 4294901760
        %v541 = vsub.f32 %v237, %v540
        %v542 = vand.u32 %v541, 4294901760
        %543 = vmatpush1.msra.mxu0 %v542
        %544 = vmatprep.subr.mxu0 0.0
        %545 = vmatpush1.msra.mxu0 0.0
        %546 = vmatprep.subr.mxu0 0.0
        %547 = vmatpush1.msra.mxu0 0.0
        %548 = vmatprep.subr.mxu0 0.0
        %549 = vmatpush1.msra.mxu0 0.0
        %550 = vmatprep.subr.mxu0 0.0
        %551 = vmatpush1.msra.mxu0 0.0
        %552 = vmatprep.subr.mxu0 0.0
        %553 = vmatpush1.msra.mxu0 0.0
        %554 = vmatprep.subr.mxu0 0.0
        %555 = vmatpush1.msra.mxu0 0.0
        %556 = vmatprep.subr.mxu0 0.0
        %557 = vmatpush1.msra.mxu0 0.0
        %558 = vmatprep.subr.mxu0 0.0
        %559 = vmatpush1.msra.mxu0 0.0
        %560 = vmatprep.subr.mxu0 0.0
        %561 = vmatpush1.msra.mxu0 0.0
        %562 = vmatprep.subr.mxu0 0.0
        %563 = vmatpush1.msra.mxu0 0.0
        %564 = vmatprep.subr.mxu0 0.0
        %565 = vmatpush1.msra.mxu0 0.0
        %566 = vmatprep.subr.mxu0 0.0
        %567 = vmatpush1.msra.mxu0 0.0
        %568 = vmatprep.subr.mxu0 0.0
        %569 = vmatpush1.msra.mxu0 0.0
        %570 = vmatprep.subr.mxu0 0.0
        %571 = vmatpush1.msra.mxu0 0.0
        %572 = vmatprep.subr.mxu0 0.0
        %573 = vmatpush1.msra.mxu0 0.0
        %574 = vmatprep.subr.mxu0 0.0
        %575 = vmatpush1.msra.mxu0 0.0
        %576 = vmatprep.subr.mxu0 0.0
        %577 = vmatpush1.msra.mxu0 0.0
        %578 = vmatprep.subr.mxu0 0.0
        %579 = vmatpush1.msra.mxu0 0.0
        %580 = vmatprep.subr.mxu0 0.0
        %581 = vmatpush1.msra.mxu0 0.0
        %582 = vmatprep.subr.mxu0 0.0
        %583 = vmatpush1.msra.mxu0 0.0
        %584 = vmatprep.subr.mxu0 0.0
        %585 = vmatpush1.msra.mxu0 0.0
        %586 = vmatprep.subr.mxu0 0.0
        %587 = vmatpush1.msra.mxu0 0.0
        %588 = vmatprep.subr.mxu0 0.0
        %589 = vmatpush1.msra.mxu0 0.0
        %590 = vmatprep.subr.mxu0 0.0
        %591 = vmatpush1.msra.mxu0 0.0
        %592 = vmatprep.subr.mxu0 0.0
        %593 = vmatpush1.msra.mxu0 0.0
        %594 = vmatprep.subr.mxu0 0.0
        %595 = vmatpush1.msra.mxu0 0.0
        %596 = vmatprep.subr.mxu0 0.0
        %597 = vmatpush1.msra.mxu0 0.0
        %598 = vmatprep.subr.mxu0 0.0
        %599 = vmatpush1.msra.mxu0 0.0
        %600 = vmatprep.subr.mxu0 0.0
        %601 = vmatpush1.msra.mxu0 0.0
        %602 = vmatprep.subr.mxu0 0.0
        %603 = vmatpush1.msra.mxu0 0.0
        %604 = vmatprep.subr.mxu0 0.0
        %605 = vmatpush1.msra.mxu0 0.0
        %606 = vmatprep.mubr.f32.mxu0 0.0
        %v607 = vand.u32 %v233, 4294901760
        %608 = vmatmul.mubr.f32.gmra.mrb[0].mxu0 %v607
        %v609 = vpop.f32.mrb[0].mxu0
        %v610 = vadd.f32 %v536, %v609
        %v611 = vpop.f32.mrb[0].mxu0
        %612 = vdwg.mxu0
        %613 = vmatprep.subr.mxu0 0.0
        %v614 = vand.u32 %v237, 4294901760
        %615 = vmatpush1.msra.mxu0 %v614
        %616 = vmatprep.subr.mxu0 0.0
        %617 = vmatpush1.msra.mxu0 0.0
        %618 = vmatprep.subr.mxu0 0.0
        %619 = vmatpush1.msra.mxu0 0.0
        %620 = vmatprep.subr.mxu0 0.0
        %621 = vmatpush1.msra.mxu0 0.0
        %622 = vmatprep.subr.mxu0 0.0
        %623 = vmatpush1.msra.mxu0 0.0
        %624 = vmatprep.subr.mxu0 0.0
        %625 = vmatpush1.msra.mxu0 0.0
        %626 = vmatprep.subr.mxu0 0.0
        %627 = vmatpush1.msra.mxu0 0.0
        %628 = vmatprep.subr.mxu0 0.0
        %629 = vmatpush1.msra.mxu0 0.0
        %630 = vmatprep.subr.mxu0 0.0
        %631 = vmatpush1.msra.mxu0 0.0
        %632 = vmatprep.subr.mxu0 0.0
        %633 = vmatpush1.msra.mxu0 0.0
        %634 = vmatprep.subr.mxu0 0.0
        %635 = vmatpush1.msra.mxu0 0.0
        %636 = vmatprep.subr.mxu0 0.0
        %637 = vmatpush1.msra.mxu0 0.0
        %638 = vmatprep.subr.mxu0 0.0
        %639 = vmatpush1.msra.mxu0 0.0
        %640 = vmatprep.subr.mxu0 0.0
        %641 = vmatpush1.msra.mxu0 0.0
        %642 = vmatprep.subr.mxu0 0.0
        %643 = vmatpush1.msra.mxu0 0.0
        %644 = vmatprep.subr.mxu0 0.0
        %645 = vmatpush1.msra.mxu0 0.0
        %646 = vmatprep.subr.mxu0 0.0
        %647 = vmatpush1.msra.mxu0 0.0
        %648 = vmatprep.subr.mxu0 0.0
        %649 = vmatpush1.msra.mxu0 0.0
        %650 = vmatprep.subr.mxu0 0.0
        %651 = vmatpush1.msra.mxu0 0.0
        %652 = vmatprep.subr.mxu0 0.0
        %653 = vmatpush1.msra.mxu0 0.0
        %654 = vmatprep.subr.mxu0 0.0
        %655 = vmatpush1.msra.mxu0 0.0
        %656 = vmatprep.subr.mxu0 0.0
        %657 = vmatpush1.msra.mxu0 0.0
        %658 = vmatprep.subr.mxu0 0.0
        %659 = vmatpush1.msra.mxu0 0.0
        %660 = vmatprep.subr.mxu0 0.0
        %661 = vmatpush1.msra.mxu0 0.0
        %662 = vmatprep.subr.mxu0 0.0
        %663 = vmatpush1.msra.mxu0 0.0
        %664 = vmatprep.subr.mxu0 0.0
        %665 = vmatpush1.msra.mxu0 0.0
        %666 = vmatprep.subr.mxu0 0.0
        %667 = vmatpush1.msra.mxu0 0.0
        %668 = vmatprep.subr.mxu0 0.0
        %669 = vmatpush1.msra.mxu0 0.0
        %670 = vmatprep.subr.mxu0 0.0
        %671 = vmatpush1.msra.mxu0 0.0
        %672 = vmatprep.subr.mxu0 0.0
        %673 = vmatpush1.msra.mxu0 0.0
        %674 = vmatprep.subr.mxu0 0.0
        %675 = vmatpush1.msra.mxu0 0.0
        %676 = vmatprep.subr.mxu0 0.0
        %677 = vmatpush1.msra.mxu0 0.0
        %678 = vmatprep.mubr.f32.mxu0 0.0
        %v679 = vand.u32 %v233, 4294901760
        %680 = vmatmul.mubr.f32.gmra.mrb[0].mxu0 %v679
        %v681 = vpop.f32.mrb[0].mxu0
        %v682 = vadd.f32 %v610, %v681
        %v683 = vpop.f32.mrb[0].mxu0
        %684 = vdwg.mxu0
        %v686 = vsel %vm231, %v229, 0
        %688 = vmatprep.subr.mxu0 0.0
        %v689 = vand.u32 %v237, 4294901760
        %690 = vmatpush1.msra.mxu0 %v689
        %691 = vmatprep.subr.mxu0 0.0
        %692 = vmatpush1.msra.mxu0 0.0
        %693 = vmatprep.subr.mxu0 0.0
        %694 = vmatpush1.msra.mxu0 0.0
        %695 = vmatprep.subr.mxu0 0.0
        %696 = vmatpush1.msra.mxu0 0.0
        %697 = vmatprep.subr.mxu0 0.0
        %698 = vmatpush1.msra.mxu0 0.0
        %699 = vmatprep.subr.mxu0 0.0
        %700 = vmatpush1.msra.mxu0 0.0
        %701 = vmatprep.subr.mxu0 0.0
        %702 = vmatpush1.msra.mxu0 0.0
        %703 = vmatprep.subr.mxu0 0.0
        %704 = vmatpush1.msra.mxu0 0.0
        %705 = vmatprep.subr.mxu0 0.0
        %706 = vmatpush1.msra.mxu0 0.0
        %707 = vmatprep.subr.mxu0 0.0
        %708 = vmatpush1.msra.mxu0 0.0
        %709 = vmatprep.subr.mxu0 0.0
        %710 = vmatpush1.msra.mxu0 0.0
        %711 = vmatprep.subr.mxu0 0.0
        %712 = vmatpush1.msra.mxu0 0.0
        %713 = vmatprep.subr.mxu0 0.0
        %714 = vmatpush1.msra.mxu0 0.0
        %715 = vmatprep.subr.mxu0 0.0
        %716 = vmatpush1.msra.mxu0 0.0
        %717 = vmatprep.subr.mxu0 0.0
        %718 = vmatpush1.msra.mxu0 0.0
        %719 = vmatprep.subr.mxu0 0.0
        %720 = vmatpush1.msra.mxu0 0.0
        %721 = vmatprep.subr.mxu0 0.0
        %722 = vmatpush1.msra.mxu0 0.0
        %723 = vmatprep.subr.mxu0 0.0
        %724 = vmatpush1.msra.mxu0 0.0
        %725 = vmatprep.subr.mxu0 0.0
        %726 = vmatpush1.msra.mxu0 0.0
        %727 = vmatprep.subr.mxu0 0.0
        %728 = vmatpush1.msra.mxu0 0.0
        %729 = vmatprep.subr.mxu0 0.0
        %730 = vmatpush1.msra.mxu0 0.0
        %731 = vmatprep.subr.mxu0 0.0
        %732 = vmatpush1.msra.mxu0 0.0
        %733 = vmatprep.subr.mxu0 0.0
        %734 = vmatpush1.msra.mxu0 0.0
        %735 = vmatprep.subr.mxu0 0.0
        %736 = vmatpush1.msra.mxu0 0.0
        %737 = vmatprep.subr.mxu0 0.0
        %738 = vmatpush1.msra.mxu0 0.0
        %739 = vmatprep.subr.mxu0 0.0
        %740 = vmatpush1.msra.mxu0 0.0
        %741 = vmatprep.subr.mxu0 0.0
        %742 = vmatpush1.msra.mxu0 0.0
        %743 = vmatprep.subr.mxu0 0.0
        %744 = vmatpush1.msra.mxu0 0.0
        %745 = vmatprep.subr.mxu0 0.0
        %746 = vmatpush1.msra.mxu0 0.0
        %747 = vmatprep.subr.mxu0 0.0
        %748 = vmatpush1.msra.mxu0 0.0
        %749 = vmatprep.subr.mxu0 0.0
        %750 = vmatpush1.msra.mxu0 0.0
        %751 = vmatprep.subr.mxu0 0.0
        %752 = vmatpush1.msra.mxu0 0.0
        %753 = vmatprep.mubr.f32.mxu0 0.0
        %v754 = vand.u32 %v686, 4294901760
        %v755 = vsub.f32 %v686, %v754
        %v756 = vand.u32 %v755, 4294901760
        %v757 = vsub.f32 %v755, %v756
        %v758 = vand.u32 %v757, 4294901760
        %759 = vmatmul.mubr.f32.gmra.mrb[0].mxu0 %v758
        %v760 = vpop.f32.mrb[0].mxu0
        %v761 = vadd.f32 0.0, %v760
        %v762 = vpop.f32.mrb[0].mxu0
        %763 = vdwg.mxu0
        %764 = vmatprep.subr.mxu0 0.0
        %v765 = vand.u32 %v237, 4294901760
        %v766 = vsub.f32 %v237, %v765
        %v767 = vand.u32 %v766, 4294901760
        %v768 = vsub.f32 %v766, %v767
        %v769 = vand.u32 %v768, 4294901760
        %770 = vmatpush1.msra.mxu0 %v769
        %771 = vmatprep.subr.mxu0 0.0
        %772 = vmatpush1.msra.mxu0 0.0
        %773 = vmatprep.subr.mxu0 0.0
        %774 = vmatpush1.msra.mxu0 0.0
        %775 = vmatprep.subr.mxu0 0.0
        %776 = vmatpush1.msra.mxu0 0.0
        %777 = vmatprep.subr.mxu0 0.0
        %778 = vmatpush1.msra.mxu0 0.0
        %779 = vmatprep.subr.mxu0 0.0
        %780 = vmatpush1.msra.mxu0 0.0
        %781 = vmatprep.subr.mxu0 0.0
        %782 = vmatpush1.msra.mxu0 0.0
        %783 = vmatprep.subr.mxu0 0.0
        %784 = vmatpush1.msra.mxu0 0.0
        %785 = vmatprep.subr.mxu0 0.0
        %786 = vmatpush1.msra.mxu0 0.0
        %787 = vmatprep.subr.mxu0 0.0
        %788 = vmatpush1.msra.mxu0 0.0
        %789 = vmatprep.subr.mxu0 0.0
        %790 = vmatpush1.msra.mxu0 0.0
        %791 = vmatprep.subr.mxu0 0.0
        %792 = vmatpush1.msra.mxu0 0.0
        %793 = vmatprep.subr.mxu0 0.0
        %794 = vmatpush1.msra.mxu0 0.0
        %795 = vmatprep.subr.mxu0 0.0
        %796 = vmatpush1.msra.mxu0 0.0
        %797 = vmatprep.subr.mxu0 0.0
        %798 = vmatpush1.msra.mxu0 0.0
        %799 = vmatprep.subr.mxu0 0.0
        %800 = vmatpush1.msra.mxu0 0.0
        %801 = vmatprep.subr.mxu0 0.0
        %802 = vmatpush1.msra.mxu0 0.0
        %803 = vmatprep.subr.mxu0 0.0
        %804 = vmatpush1.msra.mxu0 0.0
        %805 = vmatprep.subr.mxu0 0.0
        %806 = vmatpush1.msra.mxu0 0.0
        %807 = vmatprep.subr.mxu0 0.0
        %808 = vmatpush1.msra.mxu0 0.0
        %809 = vmatprep.subr.mxu0 0.0
        %810 = vmatpush1.msra.mxu0 0.0
        %811 = vmatprep.subr.mxu0 0.0
        %812 = vmatpush1.msra.mxu0 0.0
        %813 = vmatprep.subr.mxu0 0.0
        %814 = vmatpush1.msra.mxu0 0.0
        %815 = vmatprep.subr.mxu0 0.0
        %816 = vmatpush1.msra.mxu0 0.0
        %817 = vmatprep.subr.mxu0 0.0
        %818 = vmatpush1.msra.mxu0 0.0
        %819 = vmatprep.subr.mxu0 0.0
        %820 = vmatpush1.msra.mxu0 0.0
        %821 = vmatprep.subr.mxu0 0.0
        %822 = vmatpush1.msra.mxu0 0.0
        %823 = vmatprep.subr.mxu0 0.0
        %824 = vmatpush1.msra.mxu0 0.0
        %825 = vmatprep.subr.mxu0 0.0
        %826 = vmatpush1.msra.mxu0 0.0
        %827 = vmatprep.subr.mxu0 0.0
        %828 = vmatpush1.msra.mxu0 0.0
        %829 = vmatprep.subr.mxu0 0.0
        %830 = vmatpush1.msra.mxu0 0.0
        %831 = vmatprep.subr.mxu0 0.0
        %832 = vmatpush1.msra.mxu0 0.0
        %833 = vmatprep.mubr.f32.mxu0 0.0
        %v834 = vand.u32 %v686, 4294901760
        %835 = vmatmul.mubr.f32.gmra.mrb[0].mxu0 %v834
        %v836 = vpop.f32.mrb[0].mxu0
        %v837 = vadd.f32 %v761, %v836
        %v838 = vpop.f32.mrb[0].mxu0
        %839 = vdwg.mxu0
        %840 = vmatprep.subr.mxu0 0.0
        %v841 = vand.u32 %v237, 4294901760
        %v842 = vsub.f32 %v237, %v841
        %843 = vmatpush1.msra.mxu0 %v842
        %844 = vmatprep.subr.mxu0 0.0
        %845 = vmatpush1.msra.mxu0 0.0
        %846 = vmatprep.subr.mxu0 0.0
        %847 = vmatpush1.msra.mxu0 0.0
        %848 = vmatprep.subr.mxu0 0.0
        %849 = vmatpush1.msra.mxu0 0.0
        %850 = vmatprep.subr.mxu0 0.0
        %851 = vmatpush1.msra.mxu0 0.0
        %852 = vmatprep.subr.mxu0 0.0
        %853 = vmatpush1.msra.mxu0 0.0
        %854 = vmatprep.subr.mxu0 0.0
        %855 = vmatpush1.msra.mxu0 0.0
        %856 = vmatprep.subr.mxu0 0.0
        %857 = vmatpush1.msra.mxu0 0.0
        %858 = vmatprep.subr.mxu0 0.0
        %859 = vmatpush1.msra.mxu0 0.0
        %860 = vmatprep.subr.mxu0 0.0
        %861 = vmatpush1.msra.mxu0 0.0
        %862 = vmatprep.subr.mxu0 0.0
        %863 = vmatpush1.msra.mxu0 0.0
        %864 = vmatprep.subr.mxu0 0.0
        %865 = vmatpush1.msra.mxu0 0.0
        %866 = vmatprep.subr.mxu0 0.0
        %867 = vmatpush1.msra.mxu0 0.0
        %868 = vmatprep.subr.mxu0 0.0
        %869 = vmatpush1.msra.mxu0 0.0
        %870 = vmatprep.subr.mxu0 0.0
        %871 = vmatpush1.msra.mxu0 0.0
        %872 = vmatprep.subr.mxu0 0.0
        %873 = vmatpush1.msra.mxu0 0.0
        %874 = vmatprep.subr.mxu0 0.0
        %875 = vmatpush1.msra.mxu0 0.0
        %876 = vmatprep.subr.mxu0 0.0
        %877 = vmatpush1.msra.mxu0 0.0
        %878 = vmatprep.subr.mxu0 0.0
        %879 = vmatpush1.msra.mxu0 0.0
        %880 = vmatprep.subr.mxu0 0.0
        %881 = vmatpush1.msra.mxu0 0.0
        %882 = vmatprep.subr.mxu0 0.0
        %883 = vmatpush1.msra.mxu0 0.0
        %884 = vmatprep.subr.mxu0 0.0
        %885 = vmatpush1.msra.mxu0 0.0
        %886 = vmatprep.subr.mxu0 0.0
        %887 = vmatpush1.msra.mxu0 0.0
        %888 = vmatprep.subr.mxu0 0.0
        %889 = vmatpush1.msra.mxu0 0.0
        %890 = vmatprep.subr.mxu0 0.0
        %891 = vmatpush1.msra.mxu0 0.0
        %892 = vmatprep.subr.mxu0 0.0
        %893 = vmatpush1.msra.mxu0 0.0
        %894 = vmatprep.subr.mxu0 0.0
        %895 = vmatpush1.msra.mxu0 0.0
        %896 = vmatprep.subr.mxu0 0.0
        %897 = vmatpush1.msra.mxu0 0.0
        %898 = vmatprep.subr.mxu0 0.0
        %899 = vmatpush1.msra.mxu0 0.0
        %900 = vmatprep.subr.mxu0 0.0
        %901 = vmatpush1.msra.mxu0 0.0
        %902 = vmatprep.subr.mxu0 0.0
        %903 = vmatpush1.msra.mxu0 0.0
        %904 = vmatprep.subr.mxu0 0.0
        %905 = vmatpush1.msra.mxu0 0.0
        %906 = vmatprep.mubr.f32.mxu0 0.0
        %v907 = vand.u32 %v686, 4294901760
        %v908 = vsub.f32 %v686, %v907
        %909 = vmatmul.mubr.f32.gmra.mrb[0].mxu0 %v908
        %v910 = vpop.f32.mrb[0].mxu0
        %v911 = vadd.f32 %v837, %v910
        %v912 = vpop.f32.mrb[0].mxu0
        %913 = vdwg.mxu0
        %914 = vmatprep.subr.mxu0 0.0
        %v915 = vand.u32 %v237, 4294901760
        %916 = vmatpush1.msra.mxu0 %v915
        %917 = vmatprep.subr.mxu0 0.0
        %918 = vmatpush1.msra.mxu0 0.0
        %919 = vmatprep.subr.mxu0 0.0
        %920 = vmatpush1.msra.mxu0 0.0
        %921 = vmatprep.subr.mxu0 0.0
        %922 = vmatpush1.msra.mxu0 0.0
        %923 = vmatprep.subr.mxu0 0.0
        %924 = vmatpush1.msra.mxu0 0.0
        %925 = vmatprep.subr.mxu0 0.0
        %926 = vmatpush1.msra.mxu0 0.0
        %927 = vmatprep.subr.mxu0 0.0
        %928 = vmatpush1.msra.mxu0 0.0
        %929 = vmatprep.subr.mxu0 0.0
        %930 = vmatpush1.msra.mxu0 0.0
        %931 = vmatprep.subr.mxu0 0.0
        %932 = vmatpush1.msra.mxu0 0.0
        %933 = vmatprep.subr.mxu0 0.0
        %934 = vmatpush1.msra.mxu0 0.0
        %935 = vmatprep.subr.mxu0 0.0
        %936 = vmatpush1.msra.mxu0 0.0
        %937 = vmatprep.subr.mxu0 0.0
        %938 = vmatpush1.msra.mxu0 0.0
        %939 = vmatprep.subr.mxu0 0.0
        %940 = vmatpush1.msra.mxu0 0.0
        %941 = vmatprep.subr.mxu0 0.0
        %942 = vmatpush1.msra.mxu0 0.0
        %943 = vmatprep.subr.mxu0 0.0
        %944 = vmatpush1.msra.mxu0 0.0
        %945 = vmatprep.subr.mxu0 0.0
        %946 = vmatpush1.msra.mxu0 0.0
        %947 = vmatprep.subr.mxu0 0.0
        %948 = vmatpush1.msra.mxu0 0.0
        %949 = vmatprep.subr.mxu0 0.0
        %950 = vmatpush1.msra.mxu0 0.0
        %951 = vmatprep.subr.mxu0 0.0
        %952 = vmatpush1.msra.mxu0 0.0
        %953 = vmatprep.subr.mxu0 0.0
        %954 = vmatpush1.msra.mxu0 0.0
        %955 = vmatprep.subr.mxu0 0.0
        %956 = vmatpush1.msra.mxu0 0.0
        %957 = vmatprep.subr.mxu0 0.0
        %958 = vmatpush1.msra.mxu0 0.0
        %959 = vmatprep.subr.mxu0 0.0
        %960 = vmatpush1.msra.mxu0 0.0
        %961 = vmatprep.subr.mxu0 0.0
        %962 = vmatpush1.msra.mxu0 0.0
        %963 = vmatprep.subr.mxu0 0.0
        %964 = vmatpush1.msra.mxu0 0.0
        %965 = vmatprep.subr.mxu0 0.0
        %966 = vmatpush1.msra.mxu0 0.0
        %967 = vmatprep.subr.mxu0 0.0
        %968 = vmatpush1.msra.mxu0 0.0
        %969 = vmatprep.subr.mxu0 0.0
        %970 = vmatpush1.msra.mxu0 0.0
        %971 = vmatprep.subr.mxu0 0.0
        %972 = vmatpush1.msra.mxu0 0.0
        %973 = vmatprep.subr.mxu0 0.0
        %974 = vmatpush1.msra.mxu0 0.0
        %975 = vmatprep.subr.mxu0 0.0
        %976 = vmatpush1.msra.mxu0 0.0
        %977 = vmatprep.subr.mxu0 0.0
        %978 = vmatpush1.msra.mxu0 0.0
        %979 = vmatprep.mubr.f32.mxu0 0.0
        %v980 = vand.u32 %v686, 4294901760
        %v981 = vsub.f32 %v686, %v980
        %v982 = vand.u32 %v981, 4294901760
        %983 = vmatmul.mubr.f32.gmra.mrb[0].mxu0 %v982
        %v984 = vpop.f32.mrb[0].mxu0
        %v985 = vadd.f32 %v911, %v984
        %v986 = vpop.f32.mrb[0].mxu0
        %987 = vdwg.mxu0
        %988 = vmatprep.subr.mxu0 0.0
        %v989 = vand.u32 %v237, 4294901760
        %v990 = vsub.f32 %v237, %v989
        %v991 = vand.u32 %v990, 4294901760
        %992 = vmatpush1.msra.mxu0 %v991
        %993 = vmatprep.subr.mxu0 0.0
        %994 = vmatpush1.msra.mxu0 0.0
        %995 = vmatprep.subr.mxu0 0.0
        %996 = vmatpush1.msra.mxu0 0.0
        %997 = vmatprep.subr.mxu0 0.0
        %998 = vmatpush1.msra.mxu0 0.0
        %999 = vmatprep.subr.mxu0 0.0
        %1000 = vmatpush1.msra.mxu0 0.0
        %1001 = vmatprep.subr.mxu0 0.0
        %1002 = vmatpush1.msra.mxu0 0.0
        %1003 = vmatprep.subr.mxu0 0.0
        %1004 = vmatpush1.msra.mxu0 0.0
        %1005 = vmatprep.subr.mxu0 0.0
        %1006 = vmatpush1.msra.mxu0 0.0
        %1007 = vmatprep.subr.mxu0 0.0
        %1008 = vmatpush1.msra.mxu0 0.0
        %1009 = vmatprep.subr.mxu0 0.0
        %1010 = vmatpush1.msra.mxu0 0.0
        %1011 = vmatprep.subr.mxu0 0.0
        %1012 = vmatpush1.msra.mxu0 0.0
        %1013 = vmatprep.subr.mxu0 0.0
        %1014 = vmatpush1.msra.mxu0 0.0
        %1015 = vmatprep.subr.mxu0 0.0
        %1016 = vmatpush1.msra.mxu0 0.0
        %1017 = vmatprep.subr.mxu0 0.0
        %1018 = vmatpush1.msra.mxu0 0.0
        %1019 = vmatprep.subr.mxu0 0.0
        %1020 = vmatpush1.msra.mxu0 0.0
        %1021 = vmatprep.subr.mxu0 0.0
        %1022 = vmatpush1.msra.mxu0 0.0
        %1023 = vmatprep.subr.mxu0 0.0
        %1024 = vmatpush1.msra.mxu0 0.0
        %1025 = vmatprep.subr.mxu0 0.0
        %1026 = vmatpush1.msra.mxu0 0.0
        %1027 = vmatprep.subr.mxu0 0.0
        %1028 = vmatpush1.msra.mxu0 0.0
        %1029 = vmatprep.subr.mxu0 0.0
        %1030 = vmatpush1.msra.mxu0 0.0
        %1031 = vmatprep.subr.mxu0 0.0
        %1032 = vmatpush1.msra.mxu0 0.0
        %1033 = vmatprep.subr.mxu0 0.0
        %1034 = vmatpush1.msra.mxu0 0.0
        %1035 = vmatprep.subr.mxu0 0.0
        %1036 = vmatpush1.msra.mxu0 0.0
        %1037 = vmatprep.subr.mxu0 0.0
        %1038 = vmatpush1.msra.mxu0 0.0
        %1039 = vmatprep.subr.mxu0 0.0
        %1040 = vmatpush1.msra.mxu0 0.0
        %1041 = vmatprep.subr.mxu0 0.0
        %1042 = vmatpush1.msra.mxu0 0.0
        %1043 = vmatprep.subr.mxu0 0.0
        %1044 = vmatpush1.msra.mxu0 0.0
        %1045 = vmatprep.subr.mxu0 0.0
        %1046 = vmatpush1.msra.mxu0 0.0
        %1047 = vmatprep.subr.mxu0 0.0
        %1048 = vmatpush1.msra.mxu0 0.0
        %1049 = vmatprep.subr.mxu0 0.0
        %1050 = vmatpush1.msra.mxu0 0.0
        %1051 = vmatprep.subr.mxu0 0.0
        %1052 = vmatpush1.msra.mxu0 0.0
        %1053 = vmatprep.subr.mxu0 0.0
        %1054 = vmatpush1.msra.mxu0 0.0
        %1055 = vmatprep.mubr.f32.mxu0 0.0
        %v1056 = vand.u32 %v686, 4294901760
        %1057 = vmatmul.mubr.f32.gmra.mrb[0].mxu0 %v1056
        %v1058 = vpop.f32.mrb[0].mxu0
        %v1059 = vadd.f32 %v985, %v1058
        %v1060 = vpop.f32.mrb[0].mxu0
        %1061 = vdwg.mxu0
        %1062 = vmatprep.subr.mxu0 0.0
        %v1063 = vand.u32 %v237, 4294901760
        %1064 = vmatpush1.msra.mxu0 %v1063
        %1065 = vmatprep.subr.mxu0 0.0
        %1066 = vmatpush1.msra.mxu0 0.0
        %1067 = vmatprep.subr.mxu0 0.0
        %1068 = vmatpush1.msra.mxu0 0.0
        %1069 = vmatprep.subr.mxu0 0.0
        %1070 = vmatpush1.msra.mxu0 0.0
        %1071 = vmatprep.subr.mxu0 0.0
        %1072 = vmatpush1.msra.mxu0 0.0
        %1073 = vmatprep.subr.mxu0 0.0
        %1074 = vmatpush1.msra.mxu0 0.0
        %1075 = vmatprep.subr.mxu0 0.0
        %1076 = vmatpush1.msra.mxu0 0.0
        %1077 = vmatprep.subr.mxu0 0.0
        %1078 = vmatpush1.msra.mxu0 0.0
        %1079 = vmatprep.subr.mxu0 0.0
        %1080 = vmatpush1.msra.mxu0 0.0
        %1081 = vmatprep.subr.mxu0 0.0
        %1082 = vmatpush1.msra.mxu0 0.0
        %1083 = vmatprep.subr.mxu0 0.0
        %1084 = vmatpush1.msra.mxu0 0.0
        %1085 = vmatprep.subr.mxu0 0.0
        %1086 = vmatpush1.msra.mxu0 0.0
        %1087 = vmatprep.subr.mxu0 0.0
        %1088 = vmatpush1.msra.mxu0 0.0
        %1089 = vmatprep.subr.mxu0 0.0
        %1090 = vmatpush1.msra.mxu0 0.0
        %1091 = vmatprep.subr.mxu0 0.0
        %1092 = vmatpush1.msra.mxu0 0.0
        %1093 = vmatprep.subr.mxu0 0.0
        %1094 = vmatpush1.msra.mxu0 0.0
        %1095 = vmatprep.subr.mxu0 0.0
        %1096 = vmatpush1.msra.mxu0 0.0
        %1097 = vmatprep.subr.mxu0 0.0
        %1098 = vmatpush1.msra.mxu0 0.0
        %1099 = vmatprep.subr.mxu0 0.0
        %1100 = vmatpush1.msra.mxu0 0.0
        %1101 = vmatprep.subr.mxu0 0.0
        %1102 = vmatpush1.msra.mxu0 0.0
        %1103 = vmatprep.subr.mxu0 0.0
        %1104 = vmatpush1.msra.mxu0 0.0
        %1105 = vmatprep.subr.mxu0 0.0
        %1106 = vmatpush1.msra.mxu0 0.0
        %1107 = vmatprep.subr.mxu0 0.0
        %1108 = vmatpush1.msra.mxu0 0.0
        %1109 = vmatprep.subr.mxu0 0.0
        %1110 = vmatpush1.msra.mxu0 0.0
        %1111 = vmatprep.subr.mxu0 0.0
        %1112 = vmatpush1.msra.mxu0 0.0
        %1113 = vmatprep.subr.mxu0 0.0
        %1114 = vmatpush1.msra.mxu0 0.0
        %1115 = vmatprep.subr.mxu0 0.0
        %1116 = vmatpush1.msra.mxu0 0.0
        %1117 = vmatprep.subr.mxu0 0.0
        %1118 = vmatpush1.msra.mxu0 0.0
        %1119 = vmatprep.subr.mxu0 0.0
        %1120 = vmatpush1.msra.mxu0 0.0
        %1121 = vmatprep.subr.mxu0 0.0
        %1122 = vmatpush1.msra.mxu0 0.0
        %1123 = vmatprep.subr.mxu0 0.0
        %1124 = vmatpush1.msra.mxu0 0.0
        %1125 = vmatprep.subr.mxu0 0.0
        %1126 = vmatpush1.msra.mxu0 0.0
        %1127 = vmatprep.mubr.f32.mxu0 0.0
        %v1128 = vand.u32 %v686, 4294901760
        %1129 = vmatmul.mubr.f32.gmra.mrb[0].mxu0 %v1128
        %v1130 = vpop.f32.mrb[0].mxu0
        %v1131 = vadd.f32 %v1059, %v1130
        %v1132 = vpop.f32.mrb[0].mxu0
        %1133 = vdwg.mxu0
        %v1135 = vcombine.high %v682, %v682
        %v1137 = vunpack.c.l.s4 1966171168
        %v1138 = vunpack.c.0.s8 %v1137
        %v1139 = vlaneseq
        %v1140 = vshrl.u32 %v1139, 7
        %v1141 = vsub.s32 %v1138, %v1140
        %v1142 = vrot.slane %v682, %v1141
        %v1144 = vunpack.c.l.s4 1966171168
        %v1145 = vunpack.c.0.s8 %v1144
        %v1146 = vlaneseq
        %v1147 = vshrl.u32 %v1146, 7
        %v1148 = vsub.s32 %v1145, %v1147
        %v1149 = vrot.slane %v1135, %v1148
        %v1150 = vcombine.high %v1142, %v1142
        %v1151 = vcombine.high %v1149, %v1149
        %v1153 = vunpack.c.l.s4 1966171168
        %v1154 = vunpack.c.0.s8 %v1153
        %v1155 = vlaneseq
        %v1156 = vshrl.u32 %v1155, 7
        %v1157 = vsub.s32 %v1154, %v1156
        %v1158 = vrot.slane %v1142, %v1157
        %v1160 = vunpack.c.l.s4 1966171168
        %v1161 = vunpack.c.0.s8 %v1160
        %v1162 = vlaneseq
        %v1163 = vshrl.u32 %v1162, 7
        %v1164 = vsub.s32 %v1161, %v1163
        %v1165 = vrot.slane %v1149, %v1164
        %v1167 = vunpack.c.l.s4 1966171168
        %v1168 = vunpack.c.0.s8 %v1167
        %v1169 = vlaneseq
        %v1170 = vshrl.u32 %v1169, 7
        %v1171 = vsub.s32 %v1168, %v1170
        %v1172 = vrot.slane %v1150, %v1171
        %v1174 = vunpack.c.l.s4 1966171168
        %v1175 = vunpack.c.0.s8 %v1174
        %v1176 = vlaneseq
        %v1177 = vshrl.u32 %v1176, 7
        %v1178 = vsub.s32 %v1175, %v1177
        %v1179 = vrot.slane %v1151, %v1178
        %v1180 = vcombine.high %v1158, %v1158
        %v1181 = vcombine.high %v1165, %v1165
        %v1182 = vcombine.high %v1172, %v1172
        %v1183 = vcombine.high %v1179, %v1179
        %v1184 = vlaneseq
        %v1185 = vshrl.u32 %v1184, 7
        %v1186 = vsub.s32 0, %v1185
        %v1187 = vrot.slane %v1158, %v1186
        %v1188 = vlaneseq
        %v1189 = vshrl.u32 %v1188, 7
        %v1190 = vsub.s32 0, %v1189
        %v1191 = vrot.slane %v1172, %v1190
        %v1192 = vlaneseq
        %v1193 = vshrl.u32 %v1192, 7
        %v1194 = vsub.s32 0, %v1193
        %v1195 = vrot.slane %v1180, %v1194
        %v1196 = vlaneseq
        %v1197 = vshrl.u32 %v1196, 7
        %v1198 = vsub.s32 0, %v1197
        %v1199 = vrot.slane %v1182, %v1198
        %v1200 = vlaneseq
        %v1201 = vshrl.u32 %v1200, 7
        %v1202 = vsub.s32 0, %v1201
        %v1203 = vrot.slane %v1165, %v1202
        %v1204 = vlaneseq
        %v1205 = vshrl.u32 %v1204, 7
        %v1206 = vsub.s32 0, %v1205
        %v1207 = vrot.slane %v1179, %v1206
        %v1208 = vlaneseq
        %v1209 = vshrl.u32 %v1208, 7
        %v1210 = vsub.s32 0, %v1209
        %v1211 = vrot.slane %v1181, %v1210
        %v1212 = vlaneseq
        %v1213 = vshrl.u32 %v1212, 7
        %v1214 = vsub.s32 0, %v1213
        %v1215 = vrot.slane %v1183, %v1214
        %v1224 = vsub.f32 %v1187, %v1131
        %v1225 = vsub.f32 %v1191, %v1131
        %v1226 = vsub.f32 %v1195, %v1131
        %v1227 = vsub.f32 %v1199, %v1131
        %v1228 = vsub.f32 %v1203, %v1131
        %v1229 = vsub.f32 %v1207, %v1131
        %v1230 = vsub.f32 %v1211, %v1131
        %v1231 = vsub.f32 %v1215, %v1131
        %v1232 = vand.u32 2147483647, %v1224
        %v1233 = vand.u32 2147483647, %v1225
        %v1234 = vand.u32 2147483647, %v1226
        %v1235 = vand.u32 2147483647, %v1227
        %v1236 = vand.u32 2147483647, %v1228
        %v1237 = vand.u32 2147483647, %v1229
        %v1238 = vand.u32 2147483647, %v1230
        %v1239 = vand.u32 2147483647, %v1231
        %v1240 = vld [vmem:[%s3] sm:$0xff]
        %v1241 = vld [vmem:[%s3 + $0x8] sm:$0xff]
        %v1242 = vld [vmem:[%s3 + $0x10] sm:$0xff]
        %v1243 = vld [vmem:[%s3 + $0x18] sm:$0xff]
        %v1244 = vld [vmem:[%s3 + $0x20] sm:$0xff]
        %v1245 = vld [vmem:[%s3 + $0x28] sm:$0xff]
        %v1246 = vld [vmem:[%s3 + $0x30] sm:$0xff]
        %v1247 = vld [vmem:[%s3 + $0x38] sm:$0xff]
        %v1248 = vld [vmem:[%s3 + $0x40] sm:$0xff]
        %v1249 = vld [vmem:[%s3 + $0x48] sm:$0xff]
        %v1250 = vld [vmem:[%s3 + $0x50] sm:$0xff]
        %v1251 = vld [vmem:[%s3 + $0x58] sm:$0xff]
        %v1252 = vld [vmem:[%s3 + $0x60] sm:$0xff]
        %v1253 = vld [vmem:[%s3 + $0x68] sm:$0xff]
        %v1254 = vld [vmem:[%s3 + $0x70] sm:$0xff]
        %v1255 = vld [vmem:[%s3 + $0x78] sm:$0xff]
        %1256 = vmatprep.subr.mxu0 0.0
        %v1257 = vand.u32 %v1240, 4294901760
        %1258 = vmatpush1.msra.mxu0 %v1257
        %1259 = vmatprep.subr.mxu0 0.0
        %v1260 = vand.u32 %v1241, 4294901760
        %1261 = vmatpush1.msra.mxu0 %v1260
        %1262 = vmatprep.subr.mxu0 0.0
        %v1263 = vand.u32 %v1242, 4294901760
        %1264 = vmatpush1.msra.mxu0 %v1263
        %1265 = vmatprep.subr.mxu0 0.0
        %v1266 = vand.u32 %v1243, 4294901760
        %1267 = vmatpush1.msra.mxu0 %v1266
        %1268 = vmatprep.subr.mxu0 0.0
        %v1269 = vand.u32 %v1244, 4294901760
        %1270 = vmatpush1.msra.mxu0 %v1269
        %1271 = vmatprep.subr.mxu0 0.0
        %v1272 = vand.u32 %v1245, 4294901760
        %1273 = vmatpush1.msra.mxu0 %v1272
        %1274 = vmatprep.subr.mxu0 0.0
        %v1275 = vand.u32 %v1246, 4294901760
        %1276 = vmatpush1.msra.mxu0 %v1275
        %1277 = vmatprep.subr.mxu0 0.0
        %v1278 = vand.u32 %v1247, 4294901760
        %1279 = vmatpush1.msra.mxu0 %v1278
        %1280 = vmatprep.subr.mxu0 0.0
        %v1281 = vand.u32 %v1248, 4294901760
        %1282 = vmatpush1.msra.mxu0 %v1281
        %1283 = vmatprep.subr.mxu0 0.0
        %v1284 = vand.u32 %v1249, 4294901760
        %1285 = vmatpush1.msra.mxu0 %v1284
        %1286 = vmatprep.subr.mxu0 0.0
        %v1287 = vand.u32 %v1250, 4294901760
        %1288 = vmatpush1.msra.mxu0 %v1287
        %1289 = vmatprep.subr.mxu0 0.0
        %v1290 = vand.u32 %v1251, 4294901760
        %1291 = vmatpush1.msra.mxu0 %v1290
        %1292 = vmatprep.subr.mxu0 0.0
        %v1293 = vand.u32 %v1252, 4294901760
        %1294 = vmatpush1.msra.mxu0 %v1293
        %1295 = vmatprep.subr.mxu0 0.0
        %v1296 = vand.u32 %v1253, 4294901760
        %1297 = vmatpush1.msra.mxu0 %v1296
        %1298 = vmatprep.subr.mxu0 0.0
        %v1299 = vand.u32 %v1254, 4294901760
        %1300 = vmatpush1.msra.mxu0 %v1299
        %1301 = vmatprep.subr.mxu0 0.0
        %v1302 = vand.u32 %v1255, 4294901760
        %1303 = vmatpush1.msra.mxu0 %v1302
        %1304 = vmatprep.subr.mxu0 0.0
        %1305 = vmatpush1.msra.mxu0 0.0
        %1306 = vmatprep.subr.mxu0 0.0
        %1307 = vmatpush1.msra.mxu0 0.0
        %1308 = vmatprep.subr.mxu0 0.0
        %1309 = vmatpush1.msra.mxu0 0.0
        %1310 = vmatprep.subr.mxu0 0.0
        %1311 = vmatpush1.msra.mxu0 0.0
        %1312 = vmatprep.subr.mxu0 0.0
        %1313 = vmatpush1.msra.mxu0 0.0
        %1314 = vmatprep.subr.mxu0 0.0
        %1315 = vmatpush1.msra.mxu0 0.0
        %1316 = vmatprep.subr.mxu0 0.0
        %1317 = vmatpush1.msra.mxu0 0.0
        %1318 = vmatprep.subr.mxu0 0.0
        %1319 = vmatpush1.msra.mxu0 0.0
        %1320 = vmatprep.subr.mxu0 0.0
        %1321 = vmatpush1.msra.mxu0 0.0
        %1322 = vmatprep.subr.mxu0 0.0
        %1323 = vmatpush1.msra.mxu0 0.0
        %1324 = vmatprep.subr.mxu0 0.0
        %1325 = vmatpush1.msra.mxu0 0.0
        %1326 = vmatprep.subr.mxu0 0.0
        %1327 = vmatpush1.msra.mxu0 0.0
        %1328 = vmatprep.subr.mxu0 0.0
        %1329 = vmatpush1.msra.mxu0 0.0
        %1330 = vmatprep.subr.mxu0 0.0
        %1331 = vmatpush1.msra.mxu0 0.0
        %1332 = vmatprep.subr.mxu0 0.0
        %1333 = vmatpush1.msra.mxu0 0.0
        %1334 = vmatprep.subr.mxu0 0.0
        %1335 = vmatpush1.msra.mxu0 0.0
        %1336 = vmatprep.mubr.f32.mxu0 0.0
        %v1337 = vand.u32 %v1232, 4294901760
        %v1338 = vsub.f32 %v1232, %v1337
        %v1339 = vand.u32 %v1338, 4294901760
        %v1340 = vsub.f32 %v1338, %v1339
        %v1341 = vand.u32 %v1340, 4294901760
        %1342 = vmatmul.mubr.f32.gmra.mrb[0].mxu0 %v1341
        %v1343 = vpop.f32.mrb[0].mxu0
        %v1344 = vadd.f32 0.0, %v1343
        %v1345 = vpop.f32.mrb[0].mxu0
        %1346 = vmatprep.mubr.f32.mxu0 0.0
        %v1347 = vand.u32 %v1233, 4294901760
        %v1348 = vsub.f32 %v1233, %v1347
        %v1349 = vand.u32 %v1348, 4294901760
        %v1350 = vsub.f32 %v1348, %v1349
        %v1351 = vand.u32 %v1350, 4294901760
        %1352 = vmatmul.mubr.f32.gmra.mrb[0].mxu0 %v1351
        %v1353 = vpop.f32.mrb[0].mxu0
        %v1354 = vadd.f32 0.0, %v1353
        %v1355 = vpop.f32.mrb[0].mxu0
        %1356 = vmatprep.mubr.f32.mxu0 0.0
        %v1357 = vand.u32 %v1234, 4294901760
        %v1358 = vsub.f32 %v1234, %v1357
        %v1359 = vand.u32 %v1358, 4294901760
        %v1360 = vsub.f32 %v1358, %v1359
        %v1361 = vand.u32 %v1360, 4294901760
        %1362 = vmatmul.mubr.f32.gmra.mrb[0].mxu0 %v1361
        %v1363 = vpop.f32.mrb[0].mxu0
        %v1364 = vadd.f32 0.0, %v1363
        %v1365 = vpop.f32.mrb[0].mxu0
        %1366 = vmatprep.mubr.f32.mxu0 0.0
        %v1367 = vand.u32 %v1235, 4294901760
        %v1368 = vsub.f32 %v1235, %v1367
        %v1369 = vand.u32 %v1368, 4294901760
        %v1370 = vsub.f32 %v1368, %v1369
        %v1371 = vand.u32 %v1370, 4294901760
        %1372 = vmatmul.mubr.f32.gmra.mrb[0].mxu0 %v1371
        %v1373 = vpop.f32.mrb[0].mxu0
        %v1374 = vadd.f32 0.0, %v1373
        %v1375 = vpop.f32.mrb[0].mxu0
        %1376 = vmatprep.mubr.f32.mxu0 0.0
        %v1377 = vand.u32 %v1236, 4294901760
        %v1378 = vsub.f32 %v1236, %v1377
        %v1379 = vand.u32 %v1378, 4294901760
        %v1380 = vsub.f32 %v1378, %v1379
        %v1381 = vand.u32 %v1380, 4294901760
        %1382 = vmatmul.mubr.f32.gmra.mrb[0].mxu0 %v1381
        %v1383 = vpop.f32.mrb[0].mxu0
        %v1384 = vadd.f32 0.0, %v1383
        %v1385 = vpop.f32.mrb[0].mxu0
        %1386 = vmatprep.mubr.f32.mxu0 0.0
        %v1387 = vand.u32 %v1237, 4294901760
        %v1388 = vsub.f32 %v1237, %v1387
        %v1389 = vand.u32 %v1388, 4294901760
        %v1390 = vsub.f32 %v1388, %v1389
        %v1391 = vand.u32 %v1390, 4294901760
        %1392 = vmatmul.mubr.f32.gmra.mrb[0].mxu0 %v1391
        %v1393 = vpop.f32.mrb[0].mxu0
        %v1394 = vadd.f32 0.0, %v1393
        %v1395 = vpop.f32.mrb[0].mxu0
        %1396 = vmatprep.mubr.f32.mxu0 0.0
        %v1397 = vand.u32 %v1238, 4294901760
        %v1398 = vsub.f32 %v1238, %v1397
        %v1399 = vand.u32 %v1398, 4294901760
        %v1400 = vsub.f32 %v1398, %v1399
        %v1401 = vand.u32 %v1400, 4294901760
        %1402 = vmatmul.mubr.f32.gmra.mrb[0].mxu0 %v1401
        %v1403 = vpop.f32.mrb[0].mxu0
        %v1404 = vadd.f32 0.0, %v1403
        %v1405 = vpop.f32.mrb[0].mxu0
        %1406 = vmatprep.mubr.f32.mxu0 0.0
        %v1407 = vand.u32 %v1239, 4294901760
        %v1408 = vsub.f32 %v1239, %v1407
        %v1409 = vand.u32 %v1408, 4294901760
        %v1410 = vsub.f32 %v1408, %v1409
        %v1411 = vand.u32 %v1410, 4294901760
        %1412 = vmatmul.mubr.f32.gmra.mrb[0].mxu0 %v1411
        %v1413 = vpop.f32.mrb[0].mxu0
        %v1414 = vadd.f32 0.0, %v1413
        %v1415 = vpop.f32.mrb[0].mxu0
        %1416 = vdwg.mxu0
        %1417 = vmatprep.subr.mxu0 0.0
        %v1418 = vand.u32 %v1240, 4294901760
        %v1419 = vsub.f32 %v1240, %v1418
        %v1420 = vand.u32 %v1419, 4294901760
        %v1421 = vsub.f32 %v1419, %v1420
        %v1422 = vand.u32 %v1421, 4294901760
        %1423 = vmatpush1.msra.mxu0 %v1422
        %1424 = vmatprep.subr.mxu0 0.0
        %v1425 = vand.u32 %v1241, 4294901760
        %v1426 = vsub.f32 %v1241, %v1425
        %v1427 = vand.u32 %v1426, 4294901760
        %v1428 = vsub.f32 %v1426, %v1427
        %v1429 = vand.u32 %v1428, 4294901760
        %1430 = vmatpush1.msra.mxu0 %v1429
        %1431 = vmatprep.subr.mxu0 0.0
        %v1432 = vand.u32 %v1242, 4294901760
        %v1433 = vsub.f32 %v1242, %v1432
        %v1434 = vand.u32 %v1433, 4294901760
        %v1435 = vsub.f32 %v1433, %v1434
        %v1436 = vand.u32 %v1435, 4294901760
        %1437 = vmatpush1.msra.mxu0 %v1436
        %1438 = vmatprep.subr.mxu0 0.0
        %v1439 = vand.u32 %v1243, 4294901760
        %v1440 = vsub.f32 %v1243, %v1439
        %v1441 = vand.u32 %v1440, 4294901760
        %v1442 = vsub.f32 %v1440, %v1441
        %v1443 = vand.u32 %v1442, 4294901760
        %1444 = vmatpush1.msra.mxu0 %v1443
        %1445 = vmatprep.subr.mxu0 0.0
        %v1446 = vand.u32 %v1244, 4294901760
        %v1447 = vsub.f32 %v1244, %v1446
        %v1448 = vand.u32 %v1447, 4294901760
        %v1449 = vsub.f32 %v1447, %v1448
        %v1450 = vand.u32 %v1449, 4294901760
        %1451 = vmatpush1.msra.mxu0 %v1450
        %1452 = vmatprep.subr.mxu0 0.0
        %v1453 = vand.u32 %v1245, 4294901760
        %v1454 = vsub.f32 %v1245, %v1453
        %v1455 = vand.u32 %v1454, 4294901760
        %v1456 = vsub.f32 %v1454, %v1455
        %v1457 = vand.u32 %v1456, 4294901760
        %1458 = vmatpush1.msra.mxu0 %v1457
        %1459 = vmatprep.subr.mxu0 0.0
        %v1460 = vand.u32 %v1246, 4294901760
        %v1461 = vsub.f32 %v1246, %v1460
        %v1462 = vand.u32 %v1461, 4294901760
        %v1463 = vsub.f32 %v1461, %v1462
        %v1464 = vand.u32 %v1463, 4294901760
        %1465 = vmatpush1.msra.mxu0 %v1464
        %1466 = vmatprep.subr.mxu0 0.0
        %v1467 = vand.u32 %v1247, 4294901760
        %v1468 = vsub.f32 %v1247, %v1467
        %v1469 = vand.u32 %v1468, 4294901760
        %v1470 = vsub.f32 %v1468, %v1469
        %v1471 = vand.u32 %v1470, 4294901760
        %1472 = vmatpush1.msra.mxu0 %v1471
        %1473 = vmatprep.subr.mxu0 0.0
        %v1474 = vand.u32 %v1248, 4294901760
        %v1475 = vsub.f32 %v1248, %v1474
        %v1476 = vand.u32 %v1475, 4294901760
        %v1477 = vsub.f32 %v1475, %v1476
        %v1478 = vand.u32 %v1477, 4294901760
        %1479 = vmatpush1.msra.mxu0 %v1478
        %1480 = vmatprep.subr.mxu0 0.0
        %v1481 = vand.u32 %v1249, 4294901760
        %v1482 = vsub.f32 %v1249, %v1481
        %v1483 = vand.u32 %v1482, 4294901760
        %v1484 = vsub.f32 %v1482, %v1483
        %v1485 = vand.u32 %v1484, 4294901760
        %1486 = vmatpush1.msra.mxu0 %v1485
        %1487 = vmatprep.subr.mxu0 0.0
        %v1488 = vand.u32 %v1250, 4294901760
        %v1489 = vsub.f32 %v1250, %v1488
        %v1490 = vand.u32 %v1489, 4294901760
        %v1491 = vsub.f32 %v1489, %v1490
        %v1492 = vand.u32 %v1491, 4294901760
        %1493 = vmatpush1.msra.mxu0 %v1492
        %1494 = vmatprep.subr.mxu0 0.0
        %v1495 = vand.u32 %v1251, 4294901760
        %v1496 = vsub.f32 %v1251, %v1495
        %v1497 = vand.u32 %v1496, 4294901760
        %v1498 = vsub.f32 %v1496, %v1497
        %v1499 = vand.u32 %v1498, 4294901760
        %1500 = vmatpush1.msra.mxu0 %v1499
        %1501 = vmatprep.subr.mxu0 0.0
        %v1502 = vand.u32 %v1252, 4294901760
        %v1503 = vsub.f32 %v1252, %v1502
        %v1504 = vand.u32 %v1503, 4294901760
        %v1505 = vsub.f32 %v1503, %v1504
        %v1506 = vand.u32 %v1505, 4294901760
        %1507 = vmatpush1.msra.mxu0 %v1506
        %1508 = vmatprep.subr.mxu0 0.0
        %v1509 = vand.u32 %v1253, 4294901760
        %v1510 = vsub.f32 %v1253, %v1509
        %v1511 = vand.u32 %v1510, 4294901760
        %v1512 = vsub.f32 %v1510, %v1511
        %v1513 = vand.u32 %v1512, 4294901760
        %1514 = vmatpush1.msra.mxu0 %v1513
        %1515 = vmatprep.subr.mxu0 0.0
        %v1516 = vand.u32 %v1254, 4294901760
        %v1517 = vsub.f32 %v1254, %v1516
        %v1518 = vand.u32 %v1517, 4294901760
        %v1519 = vsub.f32 %v1517, %v1518
        %v1520 = vand.u32 %v1519, 4294901760
        %1521 = vmatpush1.msra.mxu0 %v1520
        %1522 = vmatprep.subr.mxu0 0.0
        %v1523 = vand.u32 %v1255, 4294901760
        %v1524 = vsub.f32 %v1255, %v1523
        %v1525 = vand.u32 %v1524, 4294901760
        %v1526 = vsub.f32 %v1524, %v1525
        %v1527 = vand.u32 %v1526, 4294901760
        %1528 = vmatpush1.msra.mxu0 %v1527
        %1529 = vmatprep.subr.mxu0 0.0
        %1530 = vmatpush1.msra.mxu0 0.0
        %1531 = vmatprep.subr.mxu0 0.0
        %1532 = vmatpush1.msra.mxu0 0.0
        %1533 = vmatprep.subr.mxu0 0.0
        %1534 = vmatpush1.msra.mxu0 0.0
        %1535 = vmatprep.subr.mxu0 0.0
        %1536 = vmatpush1.msra.mxu0 0.0
        %1537 = vmatprep.subr.mxu0 0.0
        %1538 = vmatpush1.msra.mxu0 0.0
        %1539 = vmatprep.subr.mxu0 0.0
        %1540 = vmatpush1.msra.mxu0 0.0
        %1541 = vmatprep.subr.mxu0 0.0
        %1542 = vmatpush1.msra.mxu0 0.0
        %1543 = vmatprep.subr.mxu0 0.0
        %1544 = vmatpush1.msra.mxu0 0.0
        %1545 = vmatprep.subr.mxu0 0.0
        %1546 = vmatpush1.msra.mxu0 0.0
        %1547 = vmatprep.subr.mxu0 0.0
        %1548 = vmatpush1.msra.mxu0 0.0
        %1549 = vmatprep.subr.mxu0 0.0
        %1550 = vmatpush1.msra.mxu0 0.0
        %1551 = vmatprep.subr.mxu0 0.0
        %1552 = vmatpush1.msra.mxu0 0.0
        %1553 = vmatprep.subr.mxu0 0.0
        %1554 = vmatpush1.msra.mxu0 0.0
        %1555 = vmatprep.subr.mxu0 0.0
        %1556 = vmatpush1.msra.mxu0 0.0
        %1557 = vmatprep.subr.mxu0 0.0
        %1558 = vmatpush1.msra.mxu0 0.0
        %1559 = vmatprep.subr.mxu0 0.0
        %1560 = vmatpush1.msra.mxu0 0.0
        %1561 = vmatprep.mubr.f32.mxu0 0.0
        %v1562 = vand.u32 %v1232, 4294901760
        %1563 = vmatmul.mubr.f32.gmra.mrb[0].mxu0 %v1562
        %v1564 = vpop.f32.mrb[0].mxu0
        %v1565 = vadd.f32 %v1344, %v1564
        %v1566 = vpop.f32.mrb[0].mxu0
        %1567 = vmatprep.mubr.f32.mxu0 0.0
        %v1568 = vand.u32 %v1233, 4294901760
        %1569 = vmatmul.mubr.f32.gmra.mrb[0].mxu0 %v1568
        %v1570 = vpop.f32.mrb[0].mxu0
        %v1571 = vadd.f32 %v1354, %v1570
        %v1572 = vpop.f32.mrb[0].mxu0
        %1573 = vmatprep.mubr.f32.mxu0 0.0
        %v1574 = vand.u32 %v1234, 4294901760
        %1575 = vmatmul.mubr.f32.gmra.mrb[0].mxu0 %v1574
        %v1576 = vpop.f32.mrb[0].mxu0
        %v1577 = vadd.f32 %v1364, %v1576
        %v1578 = vpop.f32.mrb[0].mxu0
        %1579 = vmatprep.mubr.f32.mxu0 0.0
        %v1580 = vand.u32 %v1235, 4294901760
        %1581 = vmatmul.mubr.f32.gmra.mrb[0].mxu0 %v1580
        %v1582 = vpop.f32.mrb[0].mxu0
        %v1583 = vadd.f32 %v1374, %v1582
        %v1584 = vpop.f32.mrb[0].mxu0
        %1585 = vmatprep.mubr.f32.mxu0 0.0
        %v1586 = vand.u32 %v1236, 4294901760
        %1587 = vmatmul.mubr.f32.gmra.mrb[0].mxu0 %v1586
        %v1588 = vpop.f32.mrb[0].mxu0
        %v1589 = vadd.f32 %v1384, %v1588
        %v1590 = vpop.f32.mrb[0].mxu0
        %1591 = vmatprep.mubr.f32.mxu0 0.0
        %v1592 = vand.u32 %v1237, 4294901760
        %1593 = vmatmul.mubr.f32.gmra.mrb[0].mxu0 %v1592
        %v1594 = vpop.f32.mrb[0].mxu0
        %v1595 = vadd.f32 %v1394, %v1594
        %v1596 = vpop.f32.mrb[0].mxu0
        %1597 = vmatprep.mubr.f32.mxu0 0.0
        %v1598 = vand.u32 %v1238, 4294901760
        %1599 = vmatmul.mubr.f32.gmra.mrb[0].mxu0 %v1598
        %v1600 = vpop.f32.mrb[0].mxu0
        %v1601 = vadd.f32 %v1404, %v1600
        %v1602 = vpop.f32.mrb[0].mxu0
        %1603 = vmatprep.mubr.f32.mxu0 0.0
        %v1604 = vand.u32 %v1239, 4294901760
        %1605 = vmatmul.mubr.f32.gmra.mrb[0].mxu0 %v1604
        %v1606 = vpop.f32.mrb[0].mxu0
        %v1607 = vadd.f32 %v1414, %v1606
        %v1608 = vpop.f32.mrb[0].mxu0
        %1609 = vdwg.mxu0
        %1610 = vmatprep.subr.mxu0 0.0
        %v1611 = vand.u32 %v1240, 4294901760
        %v1612 = vsub.f32 %v1240, %v1611
        %1613 = vmatpush1.msra.mxu0 %v1612
        %1614 = vmatprep.subr.mxu0 0.0
        %v1615 = vand.u32 %v1241, 4294901760
        %v1616 = vsub.f32 %v1241, %v1615
        %1617 = vmatpush1.msra.mxu0 %v1616
        %1618 = vmatprep.subr.mxu0 0.0
        %v1619 = vand.u32 %v1242, 4294901760
        %v1620 = vsub.f32 %v1242, %v1619
        %1621 = vmatpush1.msra.mxu0 %v1620
        %1622 = vmatprep.subr.mxu0 0.0
        %v1623 = vand.u32 %v1243, 4294901760
        %v1624 = vsub.f32 %v1243, %v1623
        %1625 = vmatpush1.msra.mxu0 %v1624
        %1626 = vmatprep.subr.mxu0 0.0
        %v1627 = vand.u32 %v1244, 4294901760
        %v1628 = vsub.f32 %v1244, %v1627
        %1629 = vmatpush1.msra.mxu0 %v1628
        %1630 = vmatprep.subr.mxu0 0.0
        %v1631 = vand.u32 %v1245, 4294901760
        %v1632 = vsub.f32 %v1245, %v1631
        %1633 = vmatpush1.msra.mxu0 %v1632
        %1634 = vmatprep.subr.mxu0 0.0
        %v1635 = vand.u32 %v1246, 4294901760
        %v1636 = vsub.f32 %v1246, %v1635
        %1637 = vmatpush1.msra.mxu0 %v1636
        %1638 = vmatprep.subr.mxu0 0.0
        %v1639 = vand.u32 %v1247, 4294901760
        %v1640 = vsub.f32 %v1247, %v1639
        %1641 = vmatpush1.msra.mxu0 %v1640
        %1642 = vmatprep.subr.mxu0 0.0
        %v1643 = vand.u32 %v1248, 4294901760
        %v1644 = vsub.f32 %v1248, %v1643
        %1645 = vmatpush1.msra.mxu0 %v1644
        %1646 = vmatprep.subr.mxu0 0.0
        %v1647 = vand.u32 %v1249, 4294901760
        %v1648 = vsub.f32 %v1249, %v1647
        %1649 = vmatpush1.msra.mxu0 %v1648
        %1650 = vmatprep.subr.mxu0 0.0
        %v1651 = vand.u32 %v1250, 4294901760
        %v1652 = vsub.f32 %v1250, %v1651
        %1653 = vmatpush1.msra.mxu0 %v1652
        %1654 = vmatprep.subr.mxu0 0.0
        %v1655 = vand.u32 %v1251, 4294901760
        %v1656 = vsub.f32 %v1251, %v1655
        %1657 = vmatpush1.msra.mxu0 %v1656
        %1658 = vmatprep.subr.mxu0 0.0
        %v1659 = vand.u32 %v1252, 4294901760
        %v1660 = vsub.f32 %v1252, %v1659
        %1661 = vmatpush1.msra.mxu0 %v1660
        %1662 = vmatprep.subr.mxu0 0.0
        %v1663 = vand.u32 %v1253, 4294901760
        %v1664 = vsub.f32 %v1253, %v1663
        %1665 = vmatpush1.msra.mxu0 %v1664
        %1666 = vmatprep.subr.mxu0 0.0
        %v1667 = vand.u32 %v1254, 4294901760
        %v1668 = vsub.f32 %v1254, %v1667
        %1669 = vmatpush1.msra.mxu0 %v1668
        %1670 = vmatprep.subr.mxu0 0.0
        %v1671 = vand.u32 %v1255, 4294901760
        %v1672 = vsub.f32 %v1255, %v1671
        %1673 = vmatpush1.msra.mxu0 %v1672
        %1674 = vmatprep.subr.mxu0 0.0
        %1675 = vmatpush1.msra.mxu0 0.0
        %1676 = vmatprep.subr.mxu0 0.0
        %1677 = vmatpush1.msra.mxu0 0.0
        %1678 = vmatprep.subr.mxu0 0.0
        %1679 = vmatpush1.msra.mxu0 0.0
        %1680 = vmatprep.subr.mxu0 0.0
        %1681 = vmatpush1.msra.mxu0 0.0
        %1682 = vmatprep.subr.mxu0 0.0
        %1683 = vmatpush1.msra.mxu0 0.0
        %1684 = vmatprep.subr.mxu0 0.0
        %1685 = vmatpush1.msra.mxu0 0.0
        %1686 = vmatprep.subr.mxu0 0.0
        %1687 = vmatpush1.msra.mxu0 0.0
        %1688 = vmatprep.subr.mxu0 0.0
        %1689 = vmatpush1.msra.mxu0 0.0
        %1690 = vmatprep.subr.mxu0 0.0
        %1691 = vmatpush1.msra.mxu0 0.0
        %1692 = vmatprep.subr.mxu0 0.0
        %1693 = vmatpush1.msra.mxu0 0.0
        %1694 = vmatprep.subr.mxu0 0.0
        %1695 = vmatpush1.msra.mxu0 0.0
        %1696 = vmatprep.subr.mxu0 0.0
        %1697 = vmatpush1.msra.mxu0 0.0
        %1698 = vmatprep.subr.mxu0 0.0
        %1699 = vmatpush1.msra.mxu0 0.0
        %1700 = vmatprep.subr.mxu0 0.0
        %1701 = vmatpush1.msra.mxu0 0.0
        %1702 = vmatprep.subr.mxu0 0.0
        %1703 = vmatpush1.msra.mxu0 0.0
        %1704 = vmatprep.subr.mxu0 0.0
        %1705 = vmatpush1.msra.mxu0 0.0
        %1706 = vmatprep.mubr.f32.mxu0 0.0
        %v1707 = vand.u32 %v1232, 4294901760
        %v1708 = vsub.f32 %v1232, %v1707
        %1709 = vmatmul.mubr.f32.gmra.mrb[0].mxu0 %v1708
        %v1710 = vpop.f32.mrb[0].mxu0
        %v1711 = vadd.f32 %v1565, %v1710
        %v1712 = vpop.f32.mrb[0].mxu0
        %1713 = vmatprep.mubr.f32.mxu0 0.0
        %v1714 = vand.u32 %v1233, 4294901760
        %v1715 = vsub.f32 %v1233, %v1714
        %1716 = vmatmul.mubr.f32.gmra.mrb[0].mxu0 %v1715
        %v1717 = vpop.f32.mrb[0].mxu0
        %v1718 = vadd.f32 %v1571, %v1717
        %v1719 = vpop.f32.mrb[0].mxu0
        %1720 = vmatprep.mubr.f32.mxu0 0.0
        %v1721 = vand.u32 %v1234, 4294901760
        %v1722 = vsub.f32 %v1234, %v1721
        %1723 = vmatmul.mubr.f32.gmra.mrb[0].mxu0 %v1722
        %v1724 = vpop.f32.mrb[0].mxu0
        %v1725 = vadd.f32 %v1577, %v1724
        %v1726 = vpop.f32.mrb[0].mxu0
        %1727 = vmatprep.mubr.f32.mxu0 0.0
        %v1728 = vand.u32 %v1235, 4294901760
        %v1729 = vsub.f32 %v1235, %v1728
        %1730 = vmatmul.mubr.f32.gmra.mrb[0].mxu0 %v1729
        %v1731 = vpop.f32.mrb[0].mxu0
        %v1732 = vadd.f32 %v1583, %v1731
        %v1733 = vpop.f32.mrb[0].mxu0
        %1734 = vmatprep.mubr.f32.mxu0 0.0
        %v1735 = vand.u32 %v1236, 4294901760
        %v1736 = vsub.f32 %v1236, %v1735
        %1737 = vmatmul.mubr.f32.gmra.mrb[0].mxu0 %v1736
        %v1738 = vpop.f32.mrb[0].mxu0
        %v1739 = vadd.f32 %v1589, %v1738
        %v1740 = vpop.f32.mrb[0].mxu0
        %1741 = vmatprep.mubr.f32.mxu0 0.0
        %v1742 = vand.u32 %v1237, 4294901760
        %v1743 = vsub.f32 %v1237, %v1742
        %1744 = vmatmul.mubr.f32.gmra.mrb[0].mxu0 %v1743
        %v1745 = vpop.f32.mrb[0].mxu0
        %v1746 = vadd.f32 %v1595, %v1745
        %v1747 = vpop.f32.mrb[0].mxu0
        %1748 = vmatprep.mubr.f32.mxu0 0.0
        %v1749 = vand.u32 %v1238, 4294901760
        %v1750 = vsub.f32 %v1238, %v1749
        %1751 = vmatmul.mubr.f32.gmra.mrb[0].mxu0 %v1750
        %v1752 = vpop.f32.mrb[0].mxu0
        %v1753 = vadd.f32 %v1601, %v1752
        %v1754 = vpop.f32.mrb[0].mxu0
        %1755 = vmatprep.mubr.f32.mxu0 0.0
        %v1756 = vand.u32 %v1239, 4294901760
        %v1757 = vsub.f32 %v1239, %v1756
        %1758 = vmatmul.mubr.f32.gmra.mrb[0].mxu0 %v1757
        %v1759 = vpop.f32.mrb[0].mxu0
        %v1760 = vadd.f32 %v1607, %v1759
        %v1761 = vpop.f32.mrb[0].mxu0
        %1762 = vdwg.mxu0
        %1763 = vmatprep.subr.mxu0 0.0
        %v1764 = vand.u32 %v1240, 4294901760
        %1765 = vmatpush1.msra.mxu0 %v1764
        %1766 = vmatprep.subr.mxu0 0.0
        %v1767 = vand.u32 %v1241, 4294901760
        %1768 = vmatpush1.msra.mxu0 %v1767
        %1769 = vmatprep.subr.mxu0 0.0
        %v1770 = vand.u32 %v1242, 4294901760
        %1771 = vmatpush1.msra.mxu0 %v1770
        %1772 = vmatprep.subr.mxu0 0.0
        %v1773 = vand.u32 %v1243, 4294901760
        %1774 = vmatpush1.msra.mxu0 %v1773
        %1775 = vmatprep.subr.mxu0 0.0
        %v1776 = vand.u32 %v1244, 4294901760
        %1777 = vmatpush1.msra.mxu0 %v1776
        %1778 = vmatprep.subr.mxu0 0.0
        %v1779 = vand.u32 %v1245, 4294901760
        %1780 = vmatpush1.msra.mxu0 %v1779
        %1781 = vmatprep.subr.mxu0 0.0
        %v1782 = vand.u32 %v1246, 4294901760
        %1783 = vmatpush1.msra.mxu0 %v1782
        %1784 = vmatprep.subr.mxu0 0.0
        %v1785 = vand.u32 %v1247, 4294901760
        %1786 = vmatpush1.msra.mxu0 %v1785
        %1787 = vmatprep.subr.mxu0 0.0
        %v1788 = vand.u32 %v1248, 4294901760
        %1789 = vmatpush1.msra.mxu0 %v1788
        %1790 = vmatprep.subr.mxu0 0.0
        %v1791 = vand.u32 %v1249, 4294901760
        %1792 = vmatpush1.msra.mxu0 %v1791
        %1793 = vmatprep.subr.mxu0 0.0
        %v1794 = vand.u32 %v1250, 4294901760
        %1795 = vmatpush1.msra.mxu0 %v1794
        %1796 = vmatprep.subr.mxu0 0.0
        %v1797 = vand.u32 %v1251, 4294901760
        %1798 = vmatpush1.msra.mxu0 %v1797
        %1799 = vmatprep.subr.mxu0 0.0
        %v1800 = vand.u32 %v1252, 4294901760
        %1801 = vmatpush1.msra.mxu0 %v1800
        %1802 = vmatprep.subr.mxu0 0.0
        %v1803 = vand.u32 %v1253, 4294901760
        %1804 = vmatpush1.msra.mxu0 %v1803
        %1805 = vmatprep.subr.mxu0 0.0
        %v1806 = vand.u32 %v1254, 4294901760
        %1807 = vmatpush1.msra.mxu0 %v1806
        %1808 = vmatprep.subr.mxu0 0.0
        %v1809 = vand.u32 %v1255, 4294901760
        %1810 = vmatpush1.msra.mxu0 %v1809
        %1811 = vmatprep.subr.mxu0 0.0
        %1812 = vmatpush1.msra.mxu0 0.0
        %1813 = vmatprep.subr.mxu0 0.0
        %1814 = vmatpush1.msra.mxu0 0.0
        %1815 = vmatprep.subr.mxu0 0.0
        %1816 = vmatpush1.msra.mxu0 0.0
        %1817 = vmatprep.subr.mxu0 0.0
        %1818 = vmatpush1.msra.mxu0 0.0
        %1819 = vmatprep.subr.mxu0 0.0
        %1820 = vmatpush1.msra.mxu0 0.0
        %1821 = vmatprep.subr.mxu0 0.0
        %1822 = vmatpush1.msra.mxu0 0.0
        %1823 = vmatprep.subr.mxu0 0.0
        %1824 = vmatpush1.msra.mxu0 0.0
        %1825 = vmatprep.subr.mxu0 0.0
        %1826 = vmatpush1.msra.mxu0 0.0
        %1827 = vmatprep.subr.mxu0 0.0
        %1828 = vmatpush1.msra.mxu0 0.0
        %1829 = vmatprep.subr.mxu0 0.0
        %1830 = vmatpush1.msra.mxu0 0.0
        %1831 = vmatprep.subr.mxu0 0.0
        %1832 = vmatpush1.msra.mxu0 0.0
        %1833 = vmatprep.subr.mxu0 0.0
        %1834 = vmatpush1.msra.mxu0 0.0
        %1835 = vmatprep.subr.mxu0 0.0
        %1836 = vmatpush1.msra.mxu0 0.0
        %1837 = vmatprep.subr.mxu0 0.0
        %1838 = vmatpush1.msra.mxu0 0.0
        %1839 = vmatprep.subr.mxu0 0.0
        %1840 = vmatpush1.msra.mxu0 0.0
        %1841 = vmatprep.subr.mxu0 0.0
        %1842 = vmatpush1.msra.mxu0 0.0
        %1843 = vmatprep.mubr.f32.mxu0 0.0
        %v1844 = vand.u32 %v1232, 4294901760
        %v1845 = vsub.f32 %v1232, %v1844
        %v1846 = vand.u32 %v1845, 4294901760
        %1847 = vmatmul.mubr.f32.gmra.mrb[0].mxu0 %v1846
        %v1848 = vpop.f32.mrb[0].mxu0
        %v1849 = vadd.f32 %v1711, %v1848
        %v1850 = vpop.f32.mrb[0].mxu0
        %1851 = vmatprep.mubr.f32.mxu0 0.0
        %v1852 = vand.u32 %v1233, 4294901760
        %v1853 = vsub.f32 %v1233, %v1852
        %v1854 = vand.u32 %v1853, 4294901760
        %1855 = vmatmul.mubr.f32.gmra.mrb[0].mxu0 %v1854
        %v1856 = vpop.f32.mrb[0].mxu0
        %v1857 = vadd.f32 %v1718, %v1856
        %v1858 = vpop.f32.mrb[0].mxu0
        %1859 = vmatprep.mubr.f32.mxu0 0.0
        %v1860 = vand.u32 %v1234, 4294901760
        %v1861 = vsub.f32 %v1234, %v1860
        %v1862 = vand.u32 %v1861, 4294901760
        %1863 = vmatmul.mubr.f32.gmra.mrb[0].mxu0 %v1862
        %v1864 = vpop.f32.mrb[0].mxu0
        %v1865 = vadd.f32 %v1725, %v1864
        %v1866 = vpop.f32.mrb[0].mxu0
        %1867 = vmatprep.mubr.f32.mxu0 0.0
        %v1868 = vand.u32 %v1235, 4294901760
        %v1869 = vsub.f32 %v1235, %v1868
        %v1870 = vand.u32 %v1869, 4294901760
        %1871 = vmatmul.mubr.f32.gmra.mrb[0].mxu0 %v1870
        %v1872 = vpop.f32.mrb[0].mxu0
        %v1873 = vadd.f32 %v1732, %v1872
        %v1874 = vpop.f32.mrb[0].mxu0
        %1875 = vmatprep.mubr.f32.mxu0 0.0
        %v1876 = vand.u32 %v1236, 4294901760
        %v1877 = vsub.f32 %v1236, %v1876
        %v1878 = vand.u32 %v1877, 4294901760
        %1879 = vmatmul.mubr.f32.gmra.mrb[0].mxu0 %v1878
        %v1880 = vpop.f32.mrb[0].mxu0
        %v1881 = vadd.f32 %v1739, %v1880
        %v1882 = vpop.f32.mrb[0].mxu0
        %1883 = vmatprep.mubr.f32.mxu0 0.0
        %v1884 = vand.u32 %v1237, 4294901760
        %v1885 = vsub.f32 %v1237, %v1884
        %v1886 = vand.u32 %v1885, 4294901760
        %1887 = vmatmul.mubr.f32.gmra.mrb[0].mxu0 %v1886
        %v1888 = vpop.f32.mrb[0].mxu0
        %v1889 = vadd.f32 %v1746, %v1888
        %v1890 = vpop.f32.mrb[0].mxu0
        %1891 = vmatprep.mubr.f32.mxu0 0.0
        %v1892 = vand.u32 %v1238, 4294901760
        %v1893 = vsub.f32 %v1238, %v1892
        %v1894 = vand.u32 %v1893, 4294901760
        %1895 = vmatmul.mubr.f32.gmra.mrb[0].mxu0 %v1894
        %v1896 = vpop.f32.mrb[0].mxu0
        %v1897 = vadd.f32 %v1753, %v1896
        %v1898 = vpop.f32.mrb[0].mxu0
        %1899 = vmatprep.mubr.f32.mxu0 0.0
        %v1900 = vand.u32 %v1239, 4294901760
        %v1901 = vsub.f32 %v1239, %v1900
        %v1902 = vand.u32 %v1901, 4294901760
        %1903 = vmatmul.mubr.f32.gmra.mrb[0].mxu0 %v1902
        %v1904 = vpop.f32.mrb[0].mxu0
        %v1905 = vadd.f32 %v1760, %v1904
        %v1906 = vpop.f32.mrb[0].mxu0
        %1907 = vdwg.mxu0
        %1908 = vmatprep.subr.mxu0 0.0
        %v1909 = vand.u32 %v1240, 4294901760
        %v1910 = vsub.f32 %v1240, %v1909
        %v1911 = vand.u32 %v1910, 4294901760
        %1912 = vmatpush1.msra.mxu0 %v1911
        %1913 = vmatprep.subr.mxu0 0.0
        %v1914 = vand.u32 %v1241, 4294901760
        %v1915 = vsub.f32 %v1241, %v1914
        %v1916 = vand.u32 %v1915, 4294901760
        %1917 = vmatpush1.msra.mxu0 %v1916
        %1918 = vmatprep.subr.mxu0 0.0
        %v1919 = vand.u32 %v1242, 4294901760
        %v1920 = vsub.f32 %v1242, %v1919
        %v1921 = vand.u32 %v1920, 4294901760
        %1922 = vmatpush1.msra.mxu0 %v1921
        %1923 = vmatprep.subr.mxu0 0.0
        %v1924 = vand.u32 %v1243, 4294901760
        %v1925 = vsub.f32 %v1243, %v1924
        %v1926 = vand.u32 %v1925, 4294901760
        %1927 = vmatpush1.msra.mxu0 %v1926
        %1928 = vmatprep.subr.mxu0 0.0
        %v1929 = vand.u32 %v1244, 4294901760
        %v1930 = vsub.f32 %v1244, %v1929
        %v1931 = vand.u32 %v1930, 4294901760
        %1932 = vmatpush1.msra.mxu0 %v1931
        %1933 = vmatprep.subr.mxu0 0.0
        %v1934 = vand.u32 %v1245, 4294901760
        %v1935 = vsub.f32 %v1245, %v1934
        %v1936 = vand.u32 %v1935, 4294901760
        %1937 = vmatpush1.msra.mxu0 %v1936
        %1938 = vmatprep.subr.mxu0 0.0
        %v1939 = vand.u32 %v1246, 4294901760
        %v1940 = vsub.f32 %v1246, %v1939
        %v1941 = vand.u32 %v1940, 4294901760
        %1942 = vmatpush1.msra.mxu0 %v1941
        %1943 = vmatprep.subr.mxu0 0.0
        %v1944 = vand.u32 %v1247, 4294901760
        %v1945 = vsub.f32 %v1247, %v1944
        %v1946 = vand.u32 %v1945, 4294901760
        %1947 = vmatpush1.msra.mxu0 %v1946
        %1948 = vmatprep.subr.mxu0 0.0
        %v1949 = vand.u32 %v1248, 4294901760
        %v1950 = vsub.f32 %v1248, %v1949
        %v1951 = vand.u32 %v1950, 4294901760
        %1952 = vmatpush1.msra.mxu0 %v1951
        %1953 = vmatprep.subr.mxu0 0.0
        %v1954 = vand.u32 %v1249, 4294901760
        %v1955 = vsub.f32 %v1249, %v1954
        %v1956 = vand.u32 %v1955, 4294901760
        %1957 = vmatpush1.msra.mxu0 %v1956
        %1958 = vmatprep.subr.mxu0 0.0
        %v1959 = vand.u32 %v1250, 4294901760
        %v1960 = vsub.f32 %v1250, %v1959
        %v1961 = vand.u32 %v1960, 4294901760
        %1962 = vmatpush1.msra.mxu0 %v1961
        %1963 = vmatprep.subr.mxu0 0.0
        %v1964 = vand.u32 %v1251, 4294901760
        %v1965 = vsub.f32 %v1251, %v1964
        %v1966 = vand.u32 %v1965, 4294901760
        %1967 = vmatpush1.msra.mxu0 %v1966
        %1968 = vmatprep.subr.mxu0 0.0
        %v1969 = vand.u32 %v1252, 4294901760
        %v1970 = vsub.f32 %v1252, %v1969
        %v1971 = vand.u32 %v1970, 4294901760
        %1972 = vmatpush1.msra.mxu0 %v1971
        %1973 = vmatprep.subr.mxu0 0.0
        %v1974 = vand.u32 %v1253, 4294901760
        %v1975 = vsub.f32 %v1253, %v1974
        %v1976 = vand.u32 %v1975, 4294901760
        %1977 = vmatpush1.msra.mxu0 %v1976
        %1978 = vmatprep.subr.mxu0 0.0
        %v1979 = vand.u32 %v1254, 4294901760
        %v1980 = vsub.f32 %v1254, %v1979
        %v1981 = vand.u32 %v1980, 4294901760
        %1982 = vmatpush1.msra.mxu0 %v1981
        %1983 = vmatprep.subr.mxu0 0.0
        %v1984 = vand.u32 %v1255, 4294901760
        %v1985 = vsub.f32 %v1255, %v1984
        %v1986 = vand.u32 %v1985, 4294901760
        %1987 = vmatpush1.msra.mxu0 %v1986
        %1988 = vmatprep.subr.mxu0 0.0
        %1989 = vmatpush1.msra.mxu0 0.0
        %1990 = vmatprep.subr.mxu0 0.0
        %1991 = vmatpush1.msra.mxu0 0.0
        %1992 = vmatprep.subr.mxu0 0.0
        %1993 = vmatpush1.msra.mxu0 0.0
        %1994 = vmatprep.subr.mxu0 0.0
        %1995 = vmatpush1.msra.mxu0 0.0
        %1996 = vmatprep.subr.mxu0 0.0
        %1997 = vmatpush1.msra.mxu0 0.0
        %1998 = vmatprep.subr.mxu0 0.0
        %1999 = vmatpush1.msra.mxu0 0.0
        %2000 = vmatprep.subr.mxu0 0.0
        %2001 = vmatpush1.msra.mxu0 0.0
        %2002 = vmatprep.subr.mxu0 0.0
        %2003 = vmatpush1.msra.mxu0 0.0
        %2004 = vmatprep.subr.mxu0 0.0
        %2005 = vmatpush1.msra.mxu0 0.0
        %2006 = vmatprep.subr.mxu0 0.0
        %2007 = vmatpush1.msra.mxu0 0.0
        %2008 = vmatprep.subr.mxu0 0.0
        %2009 = vmatpush1.msra.mxu0 0.0
        %2010 = vmatprep.subr.mxu0 0.0
        %2011 = vmatpush1.msra.mxu0 0.0
        %2012 = vmatprep.subr.mxu0 0.0
        %2013 = vmatpush1.msra.mxu0 0.0
        %2014 = vmatprep.subr.mxu0 0.0
        %2015 = vmatpush1.msra.mxu0 0.0
        %2016 = vmatprep.subr.mxu0 0.0
        %2017 = vmatpush1.msra.mxu0 0.0
        %2018 = vmatprep.subr.mxu0 0.0
        %2019 = vmatpush1.msra.mxu0 0.0
        %2020 = vmatprep.mubr.f32.mxu0 0.0
        %v2021 = vand.u32 %v1232, 4294901760
        %2022 = vmatmul.mubr.f32.gmra.mrb[0].mxu0 %v2021
        %v2023 = vpop.f32.mrb[0].mxu0
        %v2024 = vadd.f32 %v1849, %v2023
        %v2025 = vpop.f32.mrb[0].mxu0
        %2026 = vmatprep.mubr.f32.mxu0 0.0
        %v2027 = vand.u32 %v1233, 4294901760
        %2028 = vmatmul.mubr.f32.gmra.mrb[0].mxu0 %v2027
        %v2029 = vpop.f32.mrb[0].mxu0
        %v2030 = vadd.f32 %v1857, %v2029
        %v2031 = vpop.f32.mrb[0].mxu0
        %2032 = vmatprep.mubr.f32.mxu0 0.0
        %v2033 = vand.u32 %v1234, 4294901760
        %2034 = vmatmul.mubr.f32.gmra.mrb[0].mxu0 %v2033
        %v2035 = vpop.f32.mrb[0].mxu0
        %v2036 = vadd.f32 %v1865, %v2035
        %v2037 = vpop.f32.mrb[0].mxu0
        %2038 = vmatprep.mubr.f32.mxu0 0.0
        %v2039 = vand.u32 %v1235, 4294901760
        %2040 = vmatmul.mubr.f32.gmra.mrb[0].mxu0 %v2039
        %v2041 = vpop.f32.mrb[0].mxu0
        %v2042 = vadd.f32 %v1873, %v2041
        %v2043 = vpop.f32.mrb[0].mxu0
        %2044 = vmatprep.mubr.f32.mxu0 0.0
        %v2045 = vand.u32 %v1236, 4294901760
        %2046 = vmatmul.mubr.f32.gmra.mrb[0].mxu0 %v2045
        %v2047 = vpop.f32.mrb[0].mxu0
        %v2048 = vadd.f32 %v1881, %v2047
        %v2049 = vpop.f32.mrb[0].mxu0
        %2050 = vmatprep.mubr.f32.mxu0 0.0
        %v2051 = vand.u32 %v1237, 4294901760
        %2052 = vmatmul.mubr.f32.gmra.mrb[0].mxu0 %v2051
        %v2053 = vpop.f32.mrb[0].mxu0
        %v2054 = vadd.f32 %v1889, %v2053
        %v2055 = vpop.f32.mrb[0].mxu0
        %2056 = vmatprep.mubr.f32.mxu0 0.0
        %v2057 = vand.u32 %v1238, 4294901760
        %2058 = vmatmul.mubr.f32.gmra.mrb[0].mxu0 %v2057
        %v2059 = vpop.f32.mrb[0].mxu0
        %v2060 = vadd.f32 %v1897, %v2059
        %v2061 = vpop.f32.mrb[0].mxu0
        %2062 = vmatprep.mubr.f32.mxu0 0.0
        %v2063 = vand.u32 %v1239, 4294901760
        %2064 = vmatmul.mubr.f32.gmra.mrb[0].mxu0 %v2063
        %v2065 = vpop.f32.mrb[0].mxu0
        %v2066 = vadd.f32 %v1905, %v2065
        %v2067 = vpop.f32.mrb[0].mxu0
        %2068 = vdwg.mxu0
        %2069 = vmatprep.subr.mxu0 0.0
        %v2070 = vand.u32 %v1240, 4294901760
        %2071 = vmatpush1.msra.mxu0 %v2070
        %2072 = vmatprep.subr.mxu0 0.0
        %v2073 = vand.u32 %v1241, 4294901760
        %2074 = vmatpush1.msra.mxu0 %v2073
        %2075 = vmatprep.subr.mxu0 0.0
        %v2076 = vand.u32 %v1242, 4294901760
        %2077 = vmatpush1.msra.mxu0 %v2076
        %2078 = vmatprep.subr.mxu0 0.0
        %v2079 = vand.u32 %v1243, 4294901760
        %2080 = vmatpush1.msra.mxu0 %v2079
        %2081 = vmatprep.subr.mxu0 0.0
        %v2082 = vand.u32 %v1244, 4294901760
        %2083 = vmatpush1.msra.mxu0 %v2082
        %2084 = vmatprep.subr.mxu0 0.0
        %v2085 = vand.u32 %v1245, 4294901760
        %2086 = vmatpush1.msra.mxu0 %v2085
        %2087 = vmatprep.subr.mxu0 0.0
        %v2088 = vand.u32 %v1246, 4294901760
        %2089 = vmatpush1.msra.mxu0 %v2088
        %2090 = vmatprep.subr.mxu0 0.0
        %v2091 = vand.u32 %v1247, 4294901760
        %2092 = vmatpush1.msra.mxu0 %v2091
        %2093 = vmatprep.subr.mxu0 0.0
        %v2094 = vand.u32 %v1248, 4294901760
        %2095 = vmatpush1.msra.mxu0 %v2094
        %2096 = vmatprep.subr.mxu0 0.0
        %v2097 = vand.u32 %v1249, 4294901760
        %2098 = vmatpush1.msra.mxu0 %v2097
        %2099 = vmatprep.subr.mxu0 0.0
        %v2100 = vand.u32 %v1250, 4294901760
        %2101 = vmatpush1.msra.mxu0 %v2100
        %2102 = vmatprep.subr.mxu0 0.0
        %v2103 = vand.u32 %v1251, 4294901760
        %2104 = vmatpush1.msra.mxu0 %v2103
        %2105 = vmatprep.subr.mxu0 0.0
        %v2106 = vand.u32 %v1252, 4294901760
        %2107 = vmatpush1.msra.mxu0 %v2106
        %2108 = vmatprep.subr.mxu0 0.0
        %v2109 = vand.u32 %v1253, 4294901760
        %2110 = vmatpush1.msra.mxu0 %v2109
        %2111 = vmatprep.subr.mxu0 0.0
        %v2112 = vand.u32 %v1254, 4294901760
        %2113 = vmatpush1.msra.mxu0 %v2112
        %2114 = vmatprep.subr.mxu0 0.0
        %v2115 = vand.u32 %v1255, 4294901760
        %2116 = vmatpush1.msra.mxu0 %v2115
        %2117 = vmatprep.subr.mxu0 0.0
        %2118 = vmatpush1.msra.mxu0 0.0
        %2119 = vmatprep.subr.mxu0 0.0
        %2120 = vmatpush1.msra.mxu0 0.0
        %2121 = vmatprep.subr.mxu0 0.0
        %2122 = vmatpush1.msra.mxu0 0.0
        %2123 = vmatprep.subr.mxu0 0.0
        %2124 = vmatpush1.msra.mxu0 0.0
        %2125 = vmatprep.subr.mxu0 0.0
        %2126 = vmatpush1.msra.mxu0 0.0
        %2127 = vmatprep.subr.mxu0 0.0
        %2128 = vmatpush1.msra.mxu0 0.0
        %2129 = vmatprep.subr.mxu0 0.0
        %2130 = vmatpush1.msra.mxu0 0.0
        %2131 = vmatprep.subr.mxu0 0.0
        %2132 = vmatpush1.msra.mxu0 0.0
        %2133 = vmatprep.subr.mxu0 0.0
        %2134 = vmatpush1.msra.mxu0 0.0
        %2135 = vmatprep.subr.mxu0 0.0
        %2136 = vmatpush1.msra.mxu0 0.0
        %2137 = vmatprep.subr.mxu0 0.0
        %2138 = vmatpush1.msra.mxu0 0.0
        %2139 = vmatprep.subr.mxu0 0.0
        %2140 = vmatpush1.msra.mxu0 0.0
        %2141 = vmatprep.subr.mxu0 0.0
        %2142 = vmatpush1.msra.mxu0 0.0
        %2143 = vmatprep.subr.mxu0 0.0
        %2144 = vmatpush1.msra.mxu0 0.0
        %2145 = vmatprep.subr.mxu0 0.0
        %2146 = vmatpush1.msra.mxu0 0.0
        %2147 = vmatprep.subr.mxu0 0.0
        %2148 = vmatpush1.msra.mxu0 0.0
        %2149 = vmatprep.mubr.f32.mxu0 0.0
        %v2150 = vand.u32 %v1232, 4294901760
        %2151 = vmatmul.mubr.f32.gmra.mrb[0].mxu0 %v2150
        %v2152 = vpop.f32.mrb[0].mxu0
        %v2153 = vadd.f32 %v2024, %v2152
        %v2154 = vpop.f32.mrb[0].mxu0
        %2155 = vmatprep.mubr.f32.mxu0 0.0
        %v2156 = vand.u32 %v1233, 4294901760
        %2157 = vmatmul.mubr.f32.gmra.mrb[0].mxu0 %v2156
        %v2158 = vpop.f32.mrb[0].mxu0
        %v2159 = vadd.f32 %v2030, %v2158
        %v2160 = vpop.f32.mrb[0].mxu0
        %2161 = vmatprep.mubr.f32.mxu0 0.0
        %v2162 = vand.u32 %v1234, 4294901760
        %2163 = vmatmul.mubr.f32.gmra.mrb[0].mxu0 %v2162
        %v2164 = vpop.f32.mrb[0].mxu0
        %v2165 = vadd.f32 %v2036, %v2164
        %v2166 = vpop.f32.mrb[0].mxu0
        %2167 = vmatprep.mubr.f32.mxu0 0.0
        %v2168 = vand.u32 %v1235, 4294901760
        %2169 = vmatmul.mubr.f32.gmra.mrb[0].mxu0 %v2168
        %v2170 = vpop.f32.mrb[0].mxu0
        %v2171 = vadd.f32 %v2042, %v2170
        %v2172 = vpop.f32.mrb[0].mxu0
        %2173 = vmatprep.mubr.f32.mxu0 0.0
        %v2174 = vand.u32 %v1236, 4294901760
        %2175 = vmatmul.mubr.f32.gmra.mrb[0].mxu0 %v2174
        %v2176 = vpop.f32.mrb[0].mxu0
        %v2177 = vadd.f32 %v2048, %v2176
        %v2178 = vpop.f32.mrb[0].mxu0
        %2179 = vmatprep.mubr.f32.mxu0 0.0
        %v2180 = vand.u32 %v1237, 4294901760
        %2181 = vmatmul.mubr.f32.gmra.mrb[0].mxu0 %v2180
        %v2182 = vpop.f32.mrb[0].mxu0
        %v2183 = vadd.f32 %v2054, %v2182
        %v2184 = vpop.f32.mrb[0].mxu0
        %2185 = vmatprep.mubr.f32.mxu0 0.0
        %v2186 = vand.u32 %v1238, 4294901760
        %2187 = vmatmul.mubr.f32.gmra.mrb[0].mxu0 %v2186
        %v2188 = vpop.f32.mrb[0].mxu0
        %v2189 = vadd.f32 %v2060, %v2188
        %v2190 = vpop.f32.mrb[0].mxu0
        %2191 = vmatprep.mubr.f32.mxu0 0.0
        %v2192 = vand.u32 %v1239, 4294901760
        %2193 = vmatmul.mubr.f32.gmra.mrb[0].mxu0 %v2192
        %v2194 = vpop.f32.mrb[0].mxu0
        %v2195 = vadd.f32 %v2066, %v2194
        %v2196 = vpop.f32.mrb[0].mxu0
        %2197 = vdwg.mxu0
        %v2198 = vld [vmem:[#allocation2] sm:$0xff]
        %v2199 = vsub.f32 0.0, %v2153
        %v2200 = vsub.f32 0.0, %v2159
        %v2201 = vsub.f32 0.0, %v2165
        %v2202 = vsub.f32 0.0, %v2171
        %v2203 = vsub.f32 0.0, %v2177
        %v2204 = vsub.f32 0.0, %v2183
        %v2205 = vsub.f32 0.0, %v2189
        %v2206 = vsub.f32 0.0, %v2195
        %v2207 = vmul.f32 %v2199, 1.442695
        %v2208 = vpow.pop %v2207
        %v2209 = vmul.f32 %v2200, 1.442695
        %v2210 = vpow.pop %v2209
        %v2211 = vmul.f32 %v2201, 1.442695
        %v2212 = vpow.pop %v2211
        %v2213 = vmul.f32 %v2202, 1.442695
        %v2214 = vpow.pop %v2213
        %v2215 = vmul.f32 %v2203, 1.442695
        %v2216 = vpow.pop %v2215
        %v2217 = vmul.f32 %v2204, 1.442695
        %v2218 = vpow.pop %v2217
        %v2219 = vmul.f32 %v2205, 1.442695
        %v2220 = vpow.pop %v2219
        %v2221 = vmul.f32 %v2206, 1.442695
        %v2222 = vpow.pop %v2221
        %vm2223 = vcmask 64512
        %v2224 = vsel %vm2223, %v2208, 0.0
        %v2225 = vrot.slane %v2224, 4
        %v2226 = vadd.f32 %v2224, %v2225
        %v2227 = vrot.slane %v2226, 2
        %v2228 = vadd.f32 %v2226, %v2227
        %v2229 = vrot.slane %v2228, 1
        %v2230 = vadd.f32 %v2228, %v2229
        %v2231 = vsel %vm2223, %v2210, 0.0
        %v2232 = vrot.slane %v2231, 4
        %v2233 = vadd.f32 %v2231, %v2232
        %v2234 = vrot.slane %v2233, 2
        %v2235 = vadd.f32 %v2233, %v2234
        %v2236 = vrot.slane %v2235, 1
        %v2237 = vadd.f32 %v2235, %v2236
        %v2238 = vsel %vm2223, %v2212, 0.0
        %v2239 = vrot.slane %v2238, 4
        %v2240 = vadd.f32 %v2238, %v2239
        %v2241 = vrot.slane %v2240, 2
        %v2242 = vadd.f32 %v2240, %v2241
        %v2243 = vrot.slane %v2242, 1
        %v2244 = vadd.f32 %v2242, %v2243
        %v2245 = vsel %vm2223, %v2214, 0.0
        %v2246 = vrot.slane %v2245, 4
        %v2247 = vadd.f32 %v2245, %v2246
        %v2248 = vrot.slane %v2247, 2
        %v2249 = vadd.f32 %v2247, %v2248
        %v2250 = vrot.slane %v2249, 1
        %v2251 = vadd.f32 %v2249, %v2250
        %v2252 = vsel %vm2223, %v2216, 0.0
        %v2253 = vrot.slane %v2252, 4
        %v2254 = vadd.f32 %v2252, %v2253
        %v2255 = vrot.slane %v2254, 2
        %v2256 = vadd.f32 %v2254, %v2255
        %v2257 = vrot.slane %v2256, 1
        %v2258 = vadd.f32 %v2256, %v2257
        %v2259 = vsel %vm2223, %v2218, 0.0
        %v2260 = vrot.slane %v2259, 4
        %v2261 = vadd.f32 %v2259, %v2260
        %v2262 = vrot.slane %v2261, 2
        %v2263 = vadd.f32 %v2261, %v2262
        %v2264 = vrot.slane %v2263, 1
        %v2265 = vadd.f32 %v2263, %v2264
        %v2266 = vsel %vm2223, %v2220, 0.0
        %v2267 = vrot.slane %v2266, 4
        %v2268 = vadd.f32 %v2266, %v2267
        %v2269 = vrot.slane %v2268, 2
        %v2270 = vadd.f32 %v2268, %v2269
        %v2271 = vrot.slane %v2270, 1
        %v2272 = vadd.f32 %v2270, %v2271
        %v2273 = vsel %vm2223, %v2222, 0.0
        %v2274 = vrot.slane %v2273, 4
        %v2275 = vadd.f32 %v2273, %v2274
        %v2276 = vrot.slane %v2275, 2
        %v2277 = vadd.f32 %v2275, %v2276
        %v2278 = vrot.slane %v2277, 1
        %v2279 = vadd.f32 %v2277, %v2278
        %vm2288 = vcmask 1041409
        %v2289 = vsel %vm2288, %v2237, %v2230
        %vm2290 = vcmask 1042434
        %v2291 = vsel %vm2290, %v2244, %v2289
        %vm2292 = vcmask 1043459
        %v2293 = vsel %vm2292, %v2251, %v2291
        %vm2294 = vcmask 1044484
        %v2295 = vsel %vm2294, %v2258, %v2293
        %vm2296 = vcmask 1045509
        %v2297 = vsel %vm2296, %v2265, %v2295
        %vm2298 = vcmask 1046534
        %v2299 = vsel %vm2298, %v2272, %v2297
        %vm2300 = vcmask 1047559
        %v2301 = vsel %vm2300, %v2279, %v2299
        %v2303 = vadd.f32 %v2198, %v2301
        %2304 = vst.msk [vmem:[#allocation2] sm:$0xff] %vm2223, %v2303
        %p2305 = scmp.eq.s32.totalorder %s23, 1
        // Predicated region
        $region41: #{tpu_custom_call.1} parent=35 // pred_check
          %p2306 = pneg %p2305
        $region42: #{tpu_custom_call.1} parent=35 // pred_check_branch
          %2308 = sbr.rel (%p2306) target = $region44
        $region43: #{tpu_custom_call.1} parent=35 // pred_region
          %2309 = vst.msk [vmem:[%s213] sm:$0xff] %vm231, %v228
          %v2310 = vld [vmem:[#allocation2] sm:$0xff]
          %2312 = vrot.lane.b32.xlu0 %v2310, 4
          %v2313 = vpop.permute.xlu0 %2312
          %vm2315 = vcmask 97312
          %2316 = vst.msk [vmem:[%s213] sm:$0xff] %vm2315, %v2313
        $region44: #{tpu_custom_call.1} parent=35 // pred_fallthru
          _
        %s2317 = sand.u32 %s132, 1
        %s2318 = scalar_lea.sflag [#allocation4], %s2317
        %s2319 = sand.u32 %s132, 1
        %s2320 = smul.addr %s2319, 8
        %s2321 = scalar_lea.vmem [#allocation3], %s2320
        // Predicated region
        $region45: #{tpu_custom_call.1} parent=35 // pred_check
          %p2322 = pneg %p142
        $region46: #{tpu_custom_call.1} parent=35 // pred_check_branch
          %2324 = sbr.rel (%p2322) target = $region48
        $region47: #{tpu_custom_call.1} parent=35 // pred_region
          %s2326 = ssub.s32 128, 128
          %2327 = vsyncadd %s2318, %s2326
          %s2328 = smul.addr %s22, 128
          %s2329 = scalar_lea.hbm %s4, %s2328
          %s2331 = sshll.u32 %s2321, 4
          %s2332 = int_to_ptr.vmem [resolvable:$true] %s2331
          %2334 = dma.vmem_to_hbm [thread:$0]  %s2332, 128, %s2329, %s2318
        $region48: #{tpu_custom_call.1} parent=35 // pred_fallthru
          _
      $region36: #{tpu_custom_call.1} parent=5 // pred_fallthru
        _
      %p2335 = scmp.le.s32.totalorder 2, %s13
      // Predicated region
      $region49: #{tpu_custom_call.1} parent=5 // pred_check
        %p2336 = pneg %p2335
      $region50: #{tpu_custom_call.1} parent=5 // pred_check_branch
        %2338 = sbr.rel (%p2336) target = $region52
      $region51: #{tpu_custom_call.1} parent=5 // pred_region
        %s2339 = ssub.s32 %s13, 2
        // Predicated region
        $region53: #{tpu_custom_call.1} parent=51 // pred_check
          %p2340 = pneg %p148
        $region54: #{tpu_custom_call.1} parent=51 // pred_check_branch
          %2342 = sbr.rel (%p2340) target = $region56
        $region55: #{tpu_custom_call.1} parent=51 // pred_region
          %s2343 = sand.u32 %s133, 1
          %s2344 = scalar_lea.sflag [#allocation4], %s2343
          %s2345 = sand.u32 %s133, 1
          %s2346 = smul.addr %s2345, 8
          %s2347 = scalar_lea.vmem [#allocation3], %s2346
          %2348 = dma.done %s2344, 128
        $region56: #{tpu_custom_call.1} parent=51 // pred_fallthru
          _
      $region52: #{tpu_custom_call.1} parent=5 // pred_fallthru
        _
    $region6: #{tpu_custom_call.1} parent=1 // loop_footer
      %s17 = sadd.s32 1, %s13
    $region7: #{tpu_custom_call.1} parent=1 // loop_footer_branch
      %12 = sbr.rel target = $region3
    $region8: #{tpu_custom_call.1} parent=1 // loop_exit
      _
    %2349 = vsyncpa [#allocation4], 1
    %s2350 = scalar_lea.sflag [#allocation4], 1
    %2351 = vsyncpa %s2350, 1

</llo_original>
